<compile_context>
chip_gen: v7x
topology: tpu7x:2x2x1
jax: 0.10.0
libtpu: 0.0.40
codegen_flags: <defaults>
</compile_context>

<pallas_src>
import jax
import jax.numpy as jnp
from jax.experimental import pallas as pl
from jax.experimental.pallas import tpu as pltpu

# Logical (PyTorch) dims.
IN_DIM = 4 * 55      # 220
HID = 300
OUT_DIM = 4 * 5      # 20

# Lane-padded dims (multiples of 128).  IN stays at 220 (x is fed unpadded;
# the BlockSpec full-dim exception covers it and Mosaic handles K=220).
HID_P = 384          # 300 -> 3 x 128 lanes (also 3 exact K/N tiles on v5e)
OUT_P = 128          # 20  -> 128 lanes => unmasked, lane-dense output stores

# Max batch rows per grid step.  512 = 2 full 256-row MXU passes on v6e/v7x
# and ~450 MFLOP/step, well above the ~0.35 us fixed per-step overhead.
# (v5e/v6e could go to 1024; 512 is a good cross-generation default.)
TB_MAX = 512


def mlp_kernel(x_ref, w1_ref, w2_ref, w3_ref, w4_ref, bias_ref, o_ref):
    # x: (TB, 220) f32 streamed per grid step; cast to bf16 here (VPU filler
    # hidden under the MXU).  Weights: bf16, resident across the whole grid.
    # bias: (4, HID_P) f32, one DMA; row 3 only uses the first OUT_P lanes.
    x = x_ref[...].astype(jnp.bfloat16)

    h = jnp.dot(x, w1_ref[...], preferred_element_type=jnp.float32)
    h = jnp.maximum(h + bias_ref[0:1, :], 0.0)

    h = jnp.dot(h.astype(jnp.bfloat16), w2_ref[...],
                preferred_element_type=jnp.float32)
    h = jnp.maximum(h + bias_ref[1:2, :], 0.0)

    h = jnp.dot(h.astype(jnp.bfloat16), w3_ref[...],
                preferred_element_type=jnp.float32)
    h = jnp.maximum(h + bias_ref[2:3, :], 0.0)

    out = jnp.dot(h.astype(jnp.bfloat16), w4_ref[...],
                  preferred_element_type=jnp.float32)
    o_ref[...] = (out + bias_ref[3:4, 0:OUT_P]).astype(o_ref.dtype)


def pack_params(params):
    """Zero-pad weights to lane multiples, cast to bf16, pack biases into one array."""
    (w1, b1), (w2, b2), (w3, b3), (w4, b4) = params

    def pad2(w, rows, cols):
        return jnp.pad(w, ((0, rows - w.shape[0]), (0, cols - w.shape[1])))

    w1p = pad2(w1, IN_DIM, HID_P).astype(jnp.bfloat16)   # (220, 384) — rows unpadded
    w2p = pad2(w2, HID_P, HID_P).astype(jnp.bfloat16)    # (384, 384)
    w3p = pad2(w3, HID_P, HID_P).astype(jnp.bfloat16)    # (384, 384)
    w4p = pad2(w4, HID_P, OUT_P).astype(jnp.bfloat16)    # (384, 128)

    bias = jnp.stack([
        jnp.pad(b1, (0, HID_P - HID)),
        jnp.pad(b2, (0, HID_P - HID)),
        jnp.pad(b3, (0, HID_P - HID)),
        jnp.pad(b4, (0, HID_P - OUT_DIM)),
    ]).astype(jnp.float32)                                # (4, 384), one DMA

    return w1p, w2p, w3p, w4p, bias


@jax.jit
def mlp_forward(x, w1p, w2p, w3p, w4p, bias):
    """x: [batch, 220] float32 (unpadded, uncast). Returns [batch, 20] float32."""
    batch = x.shape[0]

    # Small batches: one exact-size block (full-dim exception, no padding).
    # Large batches: 512-row tiles; Pallas masks the final partial block
    # (garbage rows stay confined to dropped output rows — rows are independent).
    tb = batch if batch <= TB_MAX else TB_MAX
    num_tiles = pl.cdiv(batch, tb)
    rows = num_tiles * tb

    flops = 2 * rows * (IN_DIM * HID_P + 2 * HID_P * HID_P + HID_P * OUT_P)
    bytes_accessed = (x.size * 4
                      + (w1p.size + w2p.size + w3p.size + w4p.size) * 2
                      + bias.size * 4
                      + rows * OUT_P * 4)

    def resident(shape):
        # Constant block index across the grid -> DMA'd once, stays in VMEM.
        return pl.BlockSpec(shape, lambda i: (0, 0))

    out = pl.pallas_call(
        mlp_kernel,
        out_shape=jax.ShapeDtypeStruct((batch, OUT_P), jnp.float32),
        grid=(num_tiles,),
        in_specs=[
            pl.BlockSpec((tb, IN_DIM), lambda i: (i, 0)),   # streamed f32 activations
            resident((IN_DIM, HID_P)),
            resident((HID_P, HID_P)),
            resident((HID_P, HID_P)),
            resident((HID_P, OUT_P)),
            resident((4, HID_P)),                           # packed biases
        ],
        out_specs=pl.BlockSpec((tb, OUT_P), lambda i: (i, 0)),
        compiler_params=pltpu.CompilerParams(
            dimension_semantics=("parallel",),              # shards tiles across TCs on v7x
            vmem_limit_bytes=16 * 1024 * 1024),             # ~2x the ~6-8 MiB footprint
        cost_estimate=pl.CostEstimate(
            flops=flops, transcendentals=0, bytes_accessed=bytes_accessed),
    )(x, w1p, w2p, w3p, w4p, bias)

    return out[:, :OUT_DIM]


def init_params(key):
    """Deterministic PyTorch-style Linear init: U(-1/sqrt(fan_in), +1/sqrt(fan_in))."""
    dims = [(IN_DIM, HID), (HID, HID), (HID, HID), (HID, OUT_DIM)]
    params = []
    for (fan_in, fan_out) in dims:
        key, kw, kb = jax.random.split(key, 3)
        bound = 1.0 / jnp.sqrt(jnp.float32(fan_in))
        w = jax.random.uniform(kw, (fan_in, fan_out), jnp.float32, -bound, bound)
        b = jax.random.uniform(kb, (fan_out,), jnp.float32, -bound, bound)
        params.append((w, b))
    return params


def reference_forward_f32(x, params):
    h = x
    for i, (w, b) in enumerate(params):
        h = h @ w + b
        if i < len(params) - 1:
            h = jnp.maximum(h, 0.0)
    return h


def reference_forward_bf16(x, params):
    # Same numerics as the kernel: bf16 operands, f32 accumulation,
    # bias + ReLU in f32.
    h = x
    for i, (w, b) in enumerate(params):
        h = jnp.dot(h.astype(jnp.bfloat16), w.astype(jnp.bfloat16),
                    preferred_element_type=jnp.float32) + b
        if i < len(params) - 1:
            h = jnp.maximum(h, 0.0)
    return h


if __name__ == "__main__":
    key = jax.random.PRNGKey(0)
    key, kx = jax.random.split(key)

    batch = 2
    x = jax.random.normal(kx, (batch, IN_DIM), jnp.float32)

    params = init_params(key)
    packed = pack_params(params)

    out = mlp_forward(x, *packed)
    out = jax.block_until_ready(out)
    assert out.shape == (batch, OUT_DIM), out.shape

    # Exact-numerics reference (bf16 operands, f32 accumulation) — tight check.
    ref_bf16 = reference_forward_bf16(x, params)
    assert jnp.allclose(out, ref_bf16, atol=1e-3, rtol=1e-3), \
        "mismatch vs bf16-matched JAX reference"

    # Full-f32 reference — loose sanity check (bf16 weights relax precision).
    ref_f32 = reference_forward_f32(x, params)
    assert jnp.allclose(out, ref_f32, atol=5e-2, rtol=5e-2), \
        "mismatch vs f32 JAX reference"

    print("KERNEL_OK")
</pallas_src>

<mosaic_0001>
module attributes {stable_mosaic.version = 11 : i64} {
  func.func @mlp_kernel(%arg0: i32, %arg1: memref<2x220xf32, #tpu.memory_space<vmem>>, %arg2: memref<220x384xbf16, #tpu.memory_space<vmem>>, %arg3: memref<384x384xbf16, #tpu.memory_space<vmem>>, %arg4: memref<384x384xbf16, #tpu.memory_space<vmem>>, %arg5: memref<384x128xbf16, #tpu.memory_space<vmem>>, %arg6: memref<4x384xf32, #tpu.memory_space<vmem>>, %arg7: memref<2x128xf32, #tpu.memory_space<vmem>>) attributes {dimension_semantics = [#tpu.dimension_semantics<parallel>], iteration_bounds = array<i64: 1>, scalar_prefetch = 0 : i64, scratch_operands = 0 : i64, tpu.core_type = #tpu.core_type<tc>, window_params = [{transform_indices = @transform_0, window_bounds = array<i64: 2, 220>}, {pipeline_mode = #tpu.pipeline_mode<synchronous>, transform_indices = @transform_1, window_bounds = array<i64: 220, 384>}, {pipeline_mode = #tpu.pipeline_mode<synchronous>, transform_indices = @transform_2, window_bounds = array<i64: 384, 384>}, {pipeline_mode = #tpu.pipeline_mode<synchronous>, transform_indices = @transform_3, window_bounds = array<i64: 384, 384>}, {pipeline_mode = #tpu.pipeline_mode<synchronous>, transform_indices = @transform_4, window_bounds = array<i64: 384, 128>}, {pipeline_mode = #tpu.pipeline_mode<synchronous>, transform_indices = @transform_5, window_bounds = array<i64: 4, 384>}, {transform_indices = @transform_6, window_bounds = array<i64: 2, 128>}]} {
    %c0 = arith.constant 0 : index
    %c0_0 = arith.constant 0 : index
    %0 = vector.load %arg1[%c0, %c0_0] : memref<2x220xf32, #tpu.memory_space<vmem>>, vector<2x220xf32>
    %1 = arith.truncf %0 : vector<2x220xf32> to vector<2x220xbf16>
    %c0_1 = arith.constant 0 : index
    %c0_2 = arith.constant 0 : index
    %2 = vector.load %arg2[%c0_1, %c0_2] : memref<220x384xbf16, #tpu.memory_space<vmem>>, vector<220x384xbf16>
    %cst = arith.constant dense<0.000000e+00> : vector<2x384xf32>
    %3 = tpu.matmul %1, %2, %cst {dimension_numbers = #tpu.dot_dimension_numbers<[1], [0], [0], [1], [0, 0, 1, 1], [], []>} : vector<2x220xbf16>, vector<220x384xbf16>, vector<2x384xf32> -> vector<2x384xf32>
    %c0_3 = arith.constant 0 : index
    %c0_4 = arith.constant 0 : index
    %4 = vector.load %arg6[%c0_3, %c0_4] : memref<4x384xf32, #tpu.memory_space<vmem>>, vector<1x384xf32>
    %5 = vector.broadcast %4 : vector<1x384xf32> to vector<2x384xf32>
    %6 = arith.addf %3, %5 : vector<2x384xf32>
    %cst_5 = arith.constant 0.000000e+00 : f32
    %7 = vector.broadcast %cst_5 : f32 to vector<2x384xf32>
    %8 = arith.maximumf %6, %7 : vector<2x384xf32>
    %9 = arith.truncf %8 : vector<2x384xf32> to vector<2x384xbf16>
    %c0_6 = arith.constant 0 : index
    %c0_7 = arith.constant 0 : index
    %10 = vector.load %arg3[%c0_6, %c0_7] : memref<384x384xbf16, #tpu.memory_space<vmem>>, vector<384x384xbf16>
    %cst_8 = arith.constant dense<0.000000e+00> : vector<2x384xf32>
    %11 = tpu.matmul %9, %10, %cst_8 {dimension_numbers = #tpu.dot_dimension_numbers<[1], [0], [0], [1], [0, 0, 1, 1], [], []>} : vector<2x384xbf16>, vector<384x384xbf16>, vector<2x384xf32> -> vector<2x384xf32>
    %c1 = arith.constant 1 : index
    %c0_9 = arith.constant 0 : index
    %12 = vector.load %arg6[%c1, %c0_9] : memref<4x384xf32, #tpu.memory_space<vmem>>, vector<1x384xf32>
    %13 = vector.broadcast %12 : vector<1x384xf32> to vector<2x384xf32>
    %14 = arith.addf %11, %13 : vector<2x384xf32>
    %cst_10 = arith.constant 0.000000e+00 : f32
    %15 = vector.broadcast %cst_10 : f32 to vector<2x384xf32>
    %16 = arith.maximumf %14, %15 : vector<2x384xf32>
    %17 = arith.truncf %16 : vector<2x384xf32> to vector<2x384xbf16>
    %c0_11 = arith.constant 0 : index
    %c0_12 = arith.constant 0 : index
    %18 = vector.load %arg4[%c0_11, %c0_12] : memref<384x384xbf16, #tpu.memory_space<vmem>>, vector<384x384xbf16>
    %cst_13 = arith.constant dense<0.000000e+00> : vector<2x384xf32>
    %19 = tpu.matmul %17, %18, %cst_13 {dimension_numbers = #tpu.dot_dimension_numbers<[1], [0], [0], [1], [0, 0, 1, 1], [], []>} : vector<2x384xbf16>, vector<384x384xbf16>, vector<2x384xf32> -> vector<2x384xf32>
    %c2 = arith.constant 2 : index
    %c0_14 = arith.constant 0 : index
    %20 = vector.load %arg6[%c2, %c0_14] : memref<4x384xf32, #tpu.memory_space<vmem>>, vector<1x384xf32>
    %21 = vector.broadcast %20 : vector<1x384xf32> to vector<2x384xf32>
    %22 = arith.addf %19, %21 : vector<2x384xf32>
    %cst_15 = arith.constant 0.000000e+00 : f32
    %23 = vector.broadcast %cst_15 : f32 to vector<2x384xf32>
    %24 = arith.maximumf %22, %23 : vector<2x384xf32>
    %25 = arith.truncf %24 : vector<2x384xf32> to vector<2x384xbf16>
    %c0_16 = arith.constant 0 : index
    %c0_17 = arith.constant 0 : index
    %26 = vector.load %arg5[%c0_16, %c0_17] : memref<384x128xbf16, #tpu.memory_space<vmem>>, vector<384x128xbf16>
    %cst_18 = arith.constant dense<0.000000e+00> : vector<2x128xf32>
    %27 = tpu.matmul %25, %26, %cst_18 {dimension_numbers = #tpu.dot_dimension_numbers<[1], [0], [0], [1], [0, 0, 1, 1], [], []>} : vector<2x384xbf16>, vector<384x128xbf16>, vector<2x128xf32> -> vector<2x128xf32>
    %c3 = arith.constant 3 : index
    %c0_19 = arith.constant 0 : index
    %28 = vector.load %arg6[%c3, %c0_19] : memref<4x384xf32, #tpu.memory_space<vmem>>, vector<1x128xf32>
    %29 = vector.broadcast %28 : vector<1x128xf32> to vector<2x128xf32>
    %30 = arith.addf %27, %29 : vector<2x128xf32>
    %c0_20 = arith.constant 0 : index
    %c0_21 = arith.constant 0 : index
    %31 = vector.load %arg7[%c0_20, %c0_21] : memref<2x128xf32, #tpu.memory_space<vmem>>, vector<2x128xf32>
    tpu.vector_store %arg7[%c0_20, %c0_21], %30 {strides = array<i32>} : memref<2x128xf32, #tpu.memory_space<vmem>>, vector<2x128xf32>,
    return
  }
  func.func @transform_0(%arg0: i32) -> (i32, i32) {
    %c0_i32 = arith.constant 0 : i32
    %c0_i32_0 = arith.constant 0 : i32
    return %arg0, %c0_i32 : i32, i32
  }
  func.func @transform_1(%arg0: i32) -> (i32, i32) {
    %c0_i32 = arith.constant 0 : i32
    %c0_i32_0 = arith.constant 0 : i32
    %c0_i32_1 = arith.constant 0 : i32
    return %c0_i32, %c0_i32_0 : i32, i32
  }
  func.func @transform_2(%arg0: i32) -> (i32, i32) {
    %c0_i32 = arith.constant 0 : i32
    %c0_i32_0 = arith.constant 0 : i32
    %c0_i32_1 = arith.constant 0 : i32
    return %c0_i32, %c0_i32_0 : i32, i32
  }
  func.func @transform_3(%arg0: i32) -> (i32, i32) {
    %c0_i32 = arith.constant 0 : i32
    %c0_i32_0 = arith.constant 0 : i32
    %c0_i32_1 = arith.constant 0 : i32
    return %c0_i32, %c0_i32_0 : i32, i32
  }
  func.func @transform_4(%arg0: i32) -> (i32, i32) {
    %c0_i32 = arith.constant 0 : i32
    %c0_i32_0 = arith.constant 0 : i32
    %c0_i32_1 = arith.constant 0 : i32
    return %c0_i32, %c0_i32_0 : i32, i32
  }
  func.func @transform_5(%arg0: i32) -> (i32, i32) {
    %c0_i32 = arith.constant 0 : i32
    %c0_i32_0 = arith.constant 0 : i32
    %c0_i32_1 = arith.constant 0 : i32
    return %c0_i32, %c0_i32_0 : i32, i32
  }
  func.func @transform_6(%arg0: i32) -> (i32, i32) {
    %c0_i32 = arith.constant 0 : i32
    %c0_i32_0 = arith.constant 0 : i32
    return %arg0, %c0_i32 : i32, i32
  }
}

</mosaic_0001>

<llo_original>
// kernel: mlp_forward.1
$region0: #{mlp_forward.1}
  #allocation0 [shape = 'u32[]', space=smem, size = 0x4, offset = 0x4, fixed_abs, tag = 'smem constant byte address 0x4 - core index']
  #allocation1 [shape = 'u32[144,128]{1,0:T(1,128)}', space=vmem, size = 0x12000, scoped, tag = 'internal scratch']
  %s0 = inlined_call_operand.hbm [shape: f32[2,220], index: 0, kind: input, shape index: {}]
  %s1 = inlined_call_operand.hbm [shape: bf16[220,384], index: 1, kind: input, shape index: {}]
  %s2 = inlined_call_operand.hbm [shape: bf16[384,384], index: 2, kind: input, shape index: {}]
  %s3 = inlined_call_operand.hbm [shape: bf16[384,384], index: 3, kind: input, shape index: {}]
  %s4 = inlined_call_operand.hbm [shape: bf16[384,128], index: 4, kind: input, shape index: {}]
  %s5 = inlined_call_operand.vmem [shape: f32[4,384], index: 5, kind: input, shape index: {}]
  %s6 = inlined_call_operand.hbm [shape: f32[2,128], index: 6, kind: output, shape index: {}]
  %s7 = sld [smem:[#allocation0]]
  $region54: #{mlp_forward.1} parent=0
    _
  %s9 = ssub.s32 1, %s7
  %s10 = scalar_select 0, %s9, %s7
  $region1: #{mlp_forward.1} parent=0
    #allocation2 [shape = 'u8[2048]{0}', space=vmem, size = 0x800, scoped, tag = 'input window, operand 0, single buffered']
    #allocation3 [shape = 's32[1]{0}', space=sflag, size = 0x4, scoped, tag = 'scoped memory for mlp_forward.1']
    #allocation4 [shape = 's32[1]{0}', space=sflag, size = 0x4, scoped, tag = 'scoped memory for mlp_forward.1']
    #allocation5 [shape = 'u8[172032]{0}', space=vmem, size = 0x2a000, scoped, tag = 'input window, operand 1, single buffered']
    #allocation6 [shape = 's32[1]{0}', space=sflag, size = 0x4, scoped, tag = 'scoped memory for mlp_forward.1']
    #allocation7 [shape = 'u8[294912]{0}', space=vmem, size = 0x48000, scoped, tag = 'input window, operand 2, single buffered']
    #allocation8 [shape = 'u8[294912]{0}', space=vmem, size = 0x48000, scoped, tag = 'input window, operand 3, single buffered']
    #allocation9 [shape = 's32[1]{0}', space=sflag, size = 0x4, scoped, tag = 'scoped memory for mlp_forward.1']
    #allocation10 [shape = 'u8[98304]{0}', space=vmem, size = 0x18000, scoped, tag = 'input window, operand 4, single buffered']
    #allocation11 [shape = 'u8[1024]{0}', space=vmem, size = 0x400, scoped, tag = 'output window, operand 0, single buffered']
    %11 = vsyncpa [#allocation3], 0
    %12 = vsyncpa [#allocation6], 0
    %13 = vsyncpa [#allocation9], 0
    %14 = vsyncpa [#allocation4], 0
    // Predicated region
    $region2: #{mlp_forward.1} parent=1 // pred_check
      _
    $region3: #{mlp_forward.1} parent=1 // pred_check_branch
      %16 = sbr.rel (0) target = $region5
    $region4: #{mlp_forward.1} parent=1 // pred_region
      %s18 = ssub.s32 64, 64
      %19 = vsyncadd [#allocation3], %s18
      %s21 = sshll.u32 [#allocation2], 4
      %s22 = int_to_ptr.vmem [resolvable:$true] %s21
      %24 = dma.hbm_to_vmem [thread:$0]  %s0, 64, %s22, [#allocation3]
    $region5: #{mlp_forward.1} parent=1 // pred_fallthru
      _
    // Predicated region
    $region6: #{mlp_forward.1} parent=1 // pred_check
      _
    $region7: #{mlp_forward.1} parent=1 // pred_check_branch
      %26 = sbr.rel (0) target = $region9
    $region8: #{mlp_forward.1} parent=1 // pred_region
      %s28 = ssub.s32 5376, 5376
      %29 = vsyncadd [#allocation6], %s28
      %s30 = sshll.u32 [#allocation5], 4
      %s31 = int_to_ptr.vmem [resolvable:$true] %s30
      %36 = dma.hbm_to_vmem [thread:$0]  %s1, 5376, %s31, [#allocation6], 192, 192, 12
    $region9: #{mlp_forward.1} parent=1 // pred_fallthru
      _
    // Predicated region
    $region10: #{mlp_forward.1} parent=1 // pred_check
      _
    $region11: #{mlp_forward.1} parent=1 // pred_check_branch
      %38 = sbr.rel (0) target = $region13
    $region12: #{mlp_forward.1} parent=1 // pred_region
      %s40 = ssub.s32 9216, 9216
      %41 = vsyncadd [#allocation6], %s40
      %s42 = sshll.u32 [#allocation7], 4
      %s43 = int_to_ptr.vmem [resolvable:$true] %s42
      %48 = dma.hbm_to_vmem [thread:$0]  %s2, 9216, %s43, [#allocation6], 192, 192, 12
    $region13: #{mlp_forward.1} parent=1 // pred_fallthru
      _
    // Predicated region
    $region14: #{mlp_forward.1} parent=1 // pred_check
      _
    $region15: #{mlp_forward.1} parent=1 // pred_check_branch
      %50 = sbr.rel (0) target = $region17
    $region16: #{mlp_forward.1} parent=1 // pred_region
      %s52 = ssub.s32 9216, 9216
      %53 = vsyncadd [#allocation9], %s52
      %s54 = sshll.u32 [#allocation8], 4
      %s55 = int_to_ptr.vmem [resolvable:$true] %s54
      %60 = dma.hbm_to_vmem [thread:$0]  %s3, 9216, %s55, [#allocation9], 192, 192, 12
    $region17: #{mlp_forward.1} parent=1 // pred_fallthru
      _
    // Predicated region
    $region18: #{mlp_forward.1} parent=1 // pred_check
      _
    $region19: #{mlp_forward.1} parent=1 // pred_check_branch
      %62 = sbr.rel (0) target = $region21
    $region20: #{mlp_forward.1} parent=1 // pred_region
      %s64 = ssub.s32 3072, 3072
      %65 = vsyncadd [#allocation9], %s64
      %s66 = sshll.u32 [#allocation10], 4
      %s67 = int_to_ptr.vmem [resolvable:$true] %s66
      %72 = dma.hbm_to_vmem [thread:$0]  %s4, 3072, %s67, [#allocation9], 64, 64, 4
    $region21: #{mlp_forward.1} parent=1 // pred_fallthru
      _
    // Predicated region
    $region22: #{mlp_forward.1} parent=1 // pred_check
      _
    $region23: #{mlp_forward.1} parent=1 // pred_check_branch
      %74 = sbr.rel (0) target = $region25
    $region24: #{mlp_forward.1} parent=1 // pred_region
      _
    $region25: #{mlp_forward.1} parent=1 // pred_fallthru
      _
    // Predicated region
    $region26: #{mlp_forward.1} parent=1 // pred_check
      _
    $region27: #{mlp_forward.1} parent=1 // pred_check_branch
      %76 = sbr.rel (0) target = $region29
    $region28: #{mlp_forward.1} parent=1 // pred_region
      %77 = dma.done [#allocation3], 64
    $region29: #{mlp_forward.1} parent=1 // pred_fallthru
      _
    // Predicated region
    $region30: #{mlp_forward.1} parent=1 // pred_check
      _
    $region31: #{mlp_forward.1} parent=1 // pred_check_branch
      %79 = sbr.rel (0) target = $region33
    $region32: #{mlp_forward.1} parent=1 // pred_region
      %80 = dma.done [#allocation6], 5376
    $region33: #{mlp_forward.1} parent=1 // pred_fallthru
      _
    // Predicated region
    $region34: #{mlp_forward.1} parent=1 // pred_check
      _
    $region35: #{mlp_forward.1} parent=1 // pred_check_branch
      %82 = sbr.rel (0) target = $region37
    $region36: #{mlp_forward.1} parent=1 // pred_region
      %83 = dma.done [#allocation6], 9216
    $region37: #{mlp_forward.1} parent=1 // pred_fallthru
      _
    // Predicated region
    $region38: #{mlp_forward.1} parent=1 // pred_check
      _
    $region39: #{mlp_forward.1} parent=1 // pred_check_branch
      %85 = sbr.rel (0) target = $region41
    $region40: #{mlp_forward.1} parent=1 // pred_region
      %86 = dma.done [#allocation9], 9216
    $region41: #{mlp_forward.1} parent=1 // pred_fallthru
      _
    // Predicated region
    $region42: #{mlp_forward.1} parent=1 // pred_check
      _
    $region43: #{mlp_forward.1} parent=1 // pred_check_branch
      %88 = sbr.rel (0) target = $region45
    $region44: #{mlp_forward.1} parent=1 // pred_region
      %89 = dma.done [#allocation9], 3072
    $region45: #{mlp_forward.1} parent=1 // pred_fallthru
      _
    %v91 = vld [vmem:[#allocation2] sm:$0xf]
    %v94 = vunpack.c.l.s4 1983009808
    %v95 = vunpack.c.0.s8 %v94
    %v96 = vlaneseq
    %v97 = vshrl.u32 %v96, 7
    %v98 = vsub.s32 %v95, %v97
    %v99 = vrot.slane %v91, %v98
    %v100 = vcombine.high %v99, %v99
    %v103 = vpack.c.bf16 %v99, %v99
    %v104 = vpack.c.bf16 %v100, %v100
    %v105 = vld [vmem:[#allocation5] sm:$0xff]
    %v106 = vld [vmem:[#allocation5 + $0x8] sm:$0xf]
    %v107 = vld [vmem:[#allocation5 + $0xc] sm:$0xff]
    %v108 = vld [vmem:[#allocation5 + $0x14] sm:$0xf]
    %v109 = vld [vmem:[#allocation5 + $0x18] sm:$0xff]
    %v110 = vld [vmem:[#allocation5 + $0x20] sm:$0xf]
    %v111 = vld [vmem:[#allocation5 + $0x24] sm:$0xff]
    %v112 = vld [vmem:[#allocation5 + $0x2c] sm:$0xf]
    %v113 = vld [vmem:[#allocation5 + $0x30] sm:$0xff]
    %v114 = vld [vmem:[#allocation5 + $0x38] sm:$0xf]
    %v115 = vld [vmem:[#allocation5 + $0x3c] sm:$0xff]
    %v116 = vld [vmem:[#allocation5 + $0x44] sm:$0xf]
    %v117 = vld [vmem:[#allocation5 + $0x48] sm:$0xff]
    %v118 = vld [vmem:[#allocation5 + $0x50] sm:$0xf]
    %v119 = vld [vmem:[#allocation5 + $0x54] sm:$0xff]
    %v120 = vld [vmem:[#allocation5 + $0x5c] sm:$0xf]
    %v121 = vld [vmem:[#allocation5 + $0x60] sm:$0xff]
    %v122 = vld [vmem:[#allocation5 + $0x68] sm:$0xf]
    %v123 = vld [vmem:[#allocation5 + $0x6c] sm:$0xff]
    %v124 = vld [vmem:[#allocation5 + $0x74] sm:$0xf]
    %v125 = vld [vmem:[#allocation5 + $0x78] sm:$0xff]
    %v126 = vld [vmem:[#allocation5 + $0x80] sm:$0xf]
    %v127 = vld [vmem:[#allocation5 + $0x84] sm:$0xff]
    %v128 = vld [vmem:[#allocation5 + $0x8c] sm:$0xf]
    %v129 = vld [vmem:[#allocation5 + $0x90] sm:$0xff]
    %v130 = vld [vmem:[#allocation5 + $0x98] sm:$0xf]
    %v131 = vld [vmem:[#allocation5 + $0x9c] sm:$0xff]
    %v132 = vld [vmem:[#allocation5 + $0xa4] sm:$0xf]
    %v133 = vld [vmem:[#allocation5 + $0xa8] sm:$0xff]
    %v134 = vld [vmem:[#allocation5 + $0xb0] sm:$0xf]
    %v135 = vld [vmem:[#allocation5 + $0xb4] sm:$0xff]
    %v136 = vld [vmem:[#allocation5 + $0xbc] sm:$0xf]
    %v137 = vld [vmem:[#allocation5 + $0xc0] sm:$0xff]
    %v138 = vld [vmem:[#allocation5 + $0xc8] sm:$0xf]
    %v139 = vld [vmem:[#allocation5 + $0xcc] sm:$0xff]
    %v140 = vld [vmem:[#allocation5 + $0xd4] sm:$0xf]
    %v141 = vld [vmem:[#allocation5 + $0xd8] sm:$0xff]
    %v142 = vld [vmem:[#allocation5 + $0xe0] sm:$0xf]
    %v143 = vld [vmem:[#allocation5 + $0xe4] sm:$0xff]
    %v144 = vld [vmem:[#allocation5 + $0xec] sm:$0xf]
    %v145 = vld [vmem:[#allocation5 + $0xf0] sm:$0xff]
    %v146 = vld [vmem:[#allocation5 + $0xf8] sm:$0xf]
    %v147 = vld [vmem:[#allocation5 + $0xfc] sm:$0xff]
    %v148 = vld [vmem:[#allocation5 + $0x104] sm:$0xf]
    %v149 = vld [vmem:[#allocation5 + $0x108] sm:$0xff]
    %v150 = vld [vmem:[#allocation5 + $0x110] sm:$0xf]
    %v151 = vld [vmem:[#allocation5 + $0x114] sm:$0xff]
    %v152 = vld [vmem:[#allocation5 + $0x11c] sm:$0xf]
    %v153 = vld [vmem:[#allocation5 + $0x120] sm:$0xff]
    %v154 = vld [vmem:[#allocation5 + $0x128] sm:$0xf]
    %v155 = vld [vmem:[#allocation5 + $0x12c] sm:$0xff]
    %v156 = vld [vmem:[#allocation5 + $0x134] sm:$0xf]
    %v157 = vld [vmem:[#allocation5 + $0x138] sm:$0xff]
    %v158 = vld [vmem:[#allocation5 + $0x140] sm:$0xf]
    %v159 = vld [vmem:[#allocation5 + $0x144] sm:$0x33]
    %v160 = vld [vmem:[#allocation5 + $0x14c] sm:$0x3]
    %v161 = vld [vmem:[%s5] ss:$4 sm:$0x7]
    %v163 = vlaneseq
    %v164 = vshrl.u32 %v163, 7
    %v165 = vsub.s32 0, %v164
    %v166 = vrot.slane %v161, %v165
    %v167 = vlaneseq
    %v168 = vshrl.u32 %v167, 7
    %v169 = vsub.s32 1, %v168
    %v170 = vrot.slane %v161, %v169
    %v171 = vlaneseq
    %v172 = vshrl.u32 %v171, 7
    %v173 = vsub.s32 2, %v172
    %v174 = vrot.slane %v161, %v173
    %v234 = vunpack.c.l.b16 %v105
    %v235 = vunpack.c.h.b16 %v105
    %v236 = vunpack.c.l.b16 %v106
    %v237 = vunpack.c.l.b16 %v107
    %v238 = vunpack.c.h.b16 %v107
    %v239 = vunpack.c.l.b16 %v108
    %v240 = vunpack.c.l.b16 %v109
    %v241 = vunpack.c.h.b16 %v109
    %v242 = vunpack.c.l.b16 %v110
    %v243 = vunpack.c.l.b16 %v111
    %v244 = vunpack.c.h.b16 %v111
    %v245 = vunpack.c.l.b16 %v112
    %v246 = vunpack.c.l.b16 %v113
    %v247 = vunpack.c.h.b16 %v113
    %v248 = vunpack.c.l.b16 %v114
    %v249 = vunpack.c.l.b16 %v115
    %v250 = vunpack.c.h.b16 %v115
    %v251 = vunpack.c.l.b16 %v116
    %v252 = vunpack.c.l.b16 %v117
    %v253 = vunpack.c.h.b16 %v117
    %v254 = vunpack.c.l.b16 %v118
    %v255 = vunpack.c.l.b16 %v119
    %v256 = vunpack.c.h.b16 %v119
    %v257 = vunpack.c.l.b16 %v120
    %v258 = vunpack.c.l.b16 %v121
    %v259 = vunpack.c.h.b16 %v121
    %v260 = vunpack.c.l.b16 %v122
    %v261 = vunpack.c.l.b16 %v123
    %v262 = vunpack.c.h.b16 %v123
    %v263 = vunpack.c.l.b16 %v124
    %v264 = vunpack.c.l.b16 %v125
    %v265 = vunpack.c.h.b16 %v125
    %v266 = vunpack.c.l.b16 %v126
    %v267 = vunpack.c.l.b16 %v127
    %v268 = vunpack.c.h.b16 %v127
    %v269 = vunpack.c.l.b16 %v128
    %v270 = vunpack.c.l.b16 %v129
    %v271 = vunpack.c.h.b16 %v129
    %v272 = vunpack.c.l.b16 %v130
    %v273 = vunpack.c.l.b16 %v131
    %v274 = vunpack.c.h.b16 %v131
    %v275 = vunpack.c.l.b16 %v132
    %v276 = vunpack.c.l.b16 %v133
    %v277 = vunpack.c.h.b16 %v133
    %v278 = vunpack.c.l.b16 %v134
    %v279 = vunpack.c.l.b16 %v135
    %v280 = vunpack.c.h.b16 %v135
    %v281 = vunpack.c.l.b16 %v136
    %v282 = vunpack.c.l.b16 %v137
    %v283 = vunpack.c.h.b16 %v137
    %v284 = vunpack.c.l.b16 %v138
    %v285 = vunpack.c.l.b16 %v139
    %v286 = vunpack.c.h.b16 %v139
    %v287 = vunpack.c.l.b16 %v140
    %v288 = vunpack.c.l.b16 %v141
    %v289 = vunpack.c.h.b16 %v141
    %v290 = vunpack.c.l.b16 %v142
    %v291 = vunpack.c.l.b16 %v143
    %v292 = vunpack.c.h.b16 %v143
    %v293 = vunpack.c.l.b16 %v144
    %v294 = vunpack.c.l.b16 %v145
    %v295 = vunpack.c.h.b16 %v145
    %v296 = vunpack.c.l.b16 %v146
    %v297 = vunpack.c.l.b16 %v147
    %v298 = vunpack.c.h.b16 %v147
    %v299 = vunpack.c.l.b16 %v148
    %v300 = vunpack.c.l.b16 %v149
    %v301 = vunpack.c.h.b16 %v149
    %v302 = vunpack.c.l.b16 %v150
    %v303 = vunpack.c.l.b16 %v151
    %v304 = vunpack.c.h.b16 %v151
    %v305 = vunpack.c.l.b16 %v152
    %v306 = vunpack.c.l.b16 %v153
    %v307 = vunpack.c.h.b16 %v153
    %v308 = vunpack.c.l.b16 %v154
    %v309 = vunpack.c.l.b16 %v155
    %v310 = vunpack.c.h.b16 %v155
    %v311 = vunpack.c.l.b16 %v156
    %v312 = vunpack.c.l.b16 %v157
    %v313 = vunpack.c.h.b16 %v157
    %v314 = vunpack.c.l.b16 %v158
    %v315 = vunpack.c.l.b16 %v159
    %v316 = vunpack.c.h.b16 %v159
    %v317 = vunpack.c.l.b16 %v160
    %v318 = vpack.c.b16 %v237, %v234
    %v319 = vpack.c.b16 %v238, %v235
    %v320 = vpack.c.b16 %v239, %v236
    %v321 = vpack.c.b16 %v243, %v240
    %v322 = vpack.c.b16 %v244, %v241
    %v323 = vpack.c.b16 %v245, %v242
    %v324 = vpack.c.b16 %v249, %v246
    %v325 = vpack.c.b16 %v250, %v247
    %v326 = vpack.c.b16 %v251, %v248
    %v327 = vpack.c.b16 %v255, %v252
    %v328 = vpack.c.b16 %v256, %v253
    %v329 = vpack.c.b16 %v257, %v254
    %v330 = vpack.c.b16 %v261, %v258
    %v331 = vpack.c.b16 %v262, %v259
    %v332 = vpack.c.b16 %v263, %v260
    %v333 = vpack.c.b16 %v267, %v264
    %v334 = vpack.c.b16 %v268, %v265
    %v335 = vpack.c.b16 %v269, %v266
    %v336 = vpack.c.b16 %v273, %v270
    %v337 = vpack.c.b16 %v274, %v271
    %v338 = vpack.c.b16 %v275, %v272
    %v339 = vpack.c.b16 %v279, %v276
    %v340 = vpack.c.b16 %v280, %v277
    %v341 = vpack.c.b16 %v281, %v278
    %v342 = vpack.c.b16 %v285, %v282
    %v343 = vpack.c.b16 %v286, %v283
    %v344 = vpack.c.b16 %v287, %v284
    %v345 = vpack.c.b16 %v291, %v288
    %v346 = vpack.c.b16 %v292, %v289
    %v347 = vpack.c.b16 %v293, %v290
    %v348 = vpack.c.b16 %v297, %v294
    %v349 = vpack.c.b16 %v298, %v295
    %v350 = vpack.c.b16 %v299, %v296
    %v351 = vpack.c.b16 %v303, %v300
    %v352 = vpack.c.b16 %v304, %v301
    %v353 = vpack.c.b16 %v305, %v302
    %v354 = vpack.c.b16 %v309, %v306
    %v355 = vpack.c.b16 %v310, %v307
    %v356 = vpack.c.b16 %v311, %v308
    %v357 = vpack.c.b16 %v315, %v312
    %v358 = vpack.c.b16 %v316, %v313
    %v359 = vpack.c.b16 %v317, %v314
    %vm399 = vcmask 752640
    %v401 = vsel %vm399, %v104, 0
    %vm403 = vcmask 1045504
    %v405 = vsel %vm403, %v357, 0
    %v408 = vsel %vm403, %v358, 0
    %v411 = vsel %vm403, %v359, 0
    %413 = vmatprep.subr.bf16.mxu0 %v319
    %414 = vmatpush1.bf16.msra.mxu0 %v318
    %415 = vmatprep.subr.bf16.mxu0 %v322
    %416 = vmatpush1.bf16.msra.mxu0 %v321
    %417 = vmatprep.subr.bf16.mxu0 %v325
    %418 = vmatpush1.bf16.msra.mxu0 %v324
    %419 = vmatprep.subr.bf16.mxu0 %v328
    %420 = vmatpush1.bf16.msra.mxu0 %v327
    %421 = vmatprep.subr.bf16.mxu0 %v331
    %422 = vmatpush1.bf16.msra.mxu0 %v330
    %423 = vmatprep.subr.bf16.mxu0 %v334
    %424 = vmatpush1.bf16.msra.mxu0 %v333
    %425 = vmatprep.subr.bf16.mxu0 %v337
    %426 = vmatpush1.bf16.msra.mxu0 %v336
    %427 = vmatprep.subr.bf16.mxu0 %v340
    %428 = vmatpush1.bf16.msra.mxu0 %v339
    %429 = vmatprep.subr.bf16.mxu0 %v343
    %430 = vmatpush1.bf16.msra.mxu0 %v342
    %431 = vmatprep.subr.bf16.mxu0 %v346
    %432 = vmatpush1.bf16.msra.mxu0 %v345
    %433 = vmatprep.subr.bf16.mxu0 %v349
    %434 = vmatpush1.bf16.msra.mxu0 %v348
    %435 = vmatprep.subr.bf16.mxu0 %v352
    %436 = vmatpush1.bf16.msra.mxu0 %v351
    %437 = vmatprep.subr.bf16.mxu0 %v355
    %438 = vmatpush1.bf16.msra.mxu0 %v354
    %439 = vmatprep.subr.bf16.mxu0 %v408
    %440 = vmatpush1.bf16.msra.mxu0 %v405
    %441 = vmatprep.subr.bf16.mxu0 0
    %442 = vmatpush1.bf16.msra.mxu0 0
    %443 = vmatprep.subr.bf16.mxu0 0
    %444 = vmatpush1.bf16.msra.mxu0 0
    %445 = vmatprep.mubr.bf16.mxu0 %v401
    %446 = vmatmul.mubr.bf16.gmra.mrb[0].mxu0 %v103
    %v447 = vpop.f32.mrb[0].mxu0
    %v448 = vadd.f32 %v166, %v447
    %v449 = vpop.f32.mrb[0].mxu0
    %v450 = vadd.f32 %v170, %v449
    %v451 = vpop.f32.mrb[0].mxu0
    %v452 = vpop.f32.mrb[0].mxu0
    %453 = vdwg.mxu0
    %454 = vmatprep.subr.bf16.mxu0 0
    %455 = vmatpush1.bf16.msra.mxu0 %v320
    %456 = vmatprep.subr.bf16.mxu0 0
    %457 = vmatpush1.bf16.msra.mxu0 %v323
    %458 = vmatprep.subr.bf16.mxu0 0
    %459 = vmatpush1.bf16.msra.mxu0 %v326
    %460 = vmatprep.subr.bf16.mxu0 0
    %461 = vmatpush1.bf16.msra.mxu0 %v329
    %462 = vmatprep.subr.bf16.mxu0 0
    %463 = vmatpush1.bf16.msra.mxu0 %v332
    %464 = vmatprep.subr.bf16.mxu0 0
    %465 = vmatpush1.bf16.msra.mxu0 %v335
    %466 = vmatprep.subr.bf16.mxu0 0
    %467 = vmatpush1.bf16.msra.mxu0 %v338
    %468 = vmatprep.subr.bf16.mxu0 0
    %469 = vmatpush1.bf16.msra.mxu0 %v341
    %470 = vmatprep.subr.bf16.mxu0 0
    %471 = vmatpush1.bf16.msra.mxu0 %v344
    %472 = vmatprep.subr.bf16.mxu0 0
    %473 = vmatpush1.bf16.msra.mxu0 %v347
    %474 = vmatprep.subr.bf16.mxu0 0
    %475 = vmatpush1.bf16.msra.mxu0 %v350
    %476 = vmatprep.subr.bf16.mxu0 0
    %477 = vmatpush1.bf16.msra.mxu0 %v353
    %478 = vmatprep.subr.bf16.mxu0 0
    %479 = vmatpush1.bf16.msra.mxu0 %v356
    %480 = vmatprep.subr.bf16.mxu0 0
    %481 = vmatpush1.bf16.msra.mxu0 %v411
    %482 = vmatprep.subr.bf16.mxu0 0
    %483 = vmatpush1.bf16.msra.mxu0 0
    %484 = vmatprep.subr.bf16.mxu0 0
    %485 = vmatpush1.bf16.msra.mxu0 0
    %486 = vmatprep.mubr.bf16.mxu0 %v401
    %487 = vmatmul.mubr.bf16.gmra.mrb[0].mxu0 %v103
    %v488 = vpop.f32.mrb[0].mxu0
    %v489 = vadd.f32 %v174, %v488
    %v490 = vpop.f32.mrb[0].mxu0
    %v491 = vpop.f32.mrb[0].mxu0
    %v492 = vpop.f32.mrb[0].mxu0
    %493 = vdwg.mxu0
    %v494 = vmax.f32 %v448, 0.0
    %v495 = vmax.f32 %v450, 0.0
    %v496 = vmax.f32 %v489, 0.0
    %v497 = vpack.c.bf16 %v494, %v494
    %v498 = vpack.c.bf16 %v495, %v495
    %v499 = vpack.c.bf16 %v496, %v496
    %v500 = vld [vmem:[#allocation7] sm:$0xff]
    %v501 = vld [vmem:[#allocation7 + $0x8] sm:$0xf]
    %v502 = vld [vmem:[#allocation7 + $0xc] sm:$0xff]
    %v503 = vld [vmem:[#allocation7 + $0x14] sm:$0xf]
    %v504 = vld [vmem:[#allocation7 + $0x18] sm:$0xff]
    %v505 = vld [vmem:[#allocation7 + $0x20] sm:$0xf]
    %v506 = vld [vmem:[#allocation7 + $0x24] sm:$0xff]
    %v507 = vld [vmem:[#allocation7 + $0x2c] sm:$0xf]
    %v508 = vld [vmem:[#allocation7 + $0x30] sm:$0xff]
    %v509 = vld [vmem:[#allocation7 + $0x38] sm:$0xf]
    %v510 = vld [vmem:[#allocation7 + $0x3c] sm:$0xff]
    %v511 = vld [vmem:[#allocation7 + $0x44] sm:$0xf]
    %v512 = vld [vmem:[#allocation7 + $0x48] sm:$0xff]
    %v513 = vld [vmem:[#allocation7 + $0x50] sm:$0xf]
    %v514 = vld [vmem:[#allocation7 + $0x54] sm:$0xff]
    %v515 = vld [vmem:[#allocation7 + $0x5c] sm:$0xf]
    %v516 = vld [vmem:[#allocation7 + $0x60] sm:$0xff]
    %v517 = vld [vmem:[#allocation7 + $0x68] sm:$0xf]
    %v518 = vld [vmem:[#allocation7 + $0x6c] sm:$0xff]
    %v519 = vld [vmem:[#allocation7 + $0x74] sm:$0xf]
    %v520 = vld [vmem:[#allocation7 + $0x78] sm:$0xff]
    %v521 = vld [vmem:[#allocation7 + $0x80] sm:$0xf]
    %v522 = vld [vmem:[#allocation7 + $0x84] sm:$0xff]
    %v523 = vld [vmem:[#allocation7 + $0x8c] sm:$0xf]
    %v524 = vld [vmem:[#allocation7 + $0x90] sm:$0xff]
    %v525 = vld [vmem:[#allocation7 + $0x98] sm:$0xf]
    %v526 = vld [vmem:[#allocation7 + $0x9c] sm:$0xff]
    %v527 = vld [vmem:[#allocation7 + $0xa4] sm:$0xf]
    %v528 = vld [vmem:[#allocation7 + $0xa8] sm:$0xff]
    %v529 = vld [vmem:[#allocation7 + $0xb0] sm:$0xf]
    %v530 = vld [vmem:[#allocation7 + $0xb4] sm:$0xff]
    %v531 = vld [vmem:[#allocation7 + $0xbc] sm:$0xf]
    %v532 = vld [vmem:[#allocation7 + $0xc0] sm:$0xff]
    %v533 = vld [vmem:[#allocation7 + $0xc8] sm:$0xf]
    %v534 = vld [vmem:[#allocation7 + $0xcc] sm:$0xff]
    %v535 = vld [vmem:[#allocation7 + $0xd4] sm:$0xf]
    %v536 = vld [vmem:[#allocation7 + $0xd8] sm:$0xff]
    %v537 = vld [vmem:[#allocation7 + $0xe0] sm:$0xf]
    %v538 = vld [vmem:[#allocation7 + $0xe4] sm:$0xff]
    %v539 = vld [vmem:[#allocation7 + $0xec] sm:$0xf]
    %v540 = vld [vmem:[#allocation7 + $0xf0] sm:$0xff]
    %v541 = vld [vmem:[#allocation7 + $0xf8] sm:$0xf]
    %v542 = vld [vmem:[#allocation7 + $0xfc] sm:$0xff]
    %v543 = vld [vmem:[#allocation7 + $0x104] sm:$0xf]
    %v544 = vld [vmem:[#allocation7 + $0x108] sm:$0xff]
    %v545 = vld [vmem:[#allocation7 + $0x110] sm:$0xf]
    %v546 = vld [vmem:[#allocation7 + $0x114] sm:$0xff]
    %v547 = vld [vmem:[#allocation7 + $0x11c] sm:$0xf]
    %v548 = vld [vmem:[#allocation7 + $0x120] sm:$0xff]
    %v549 = vld [vmem:[#allocation7 + $0x128] sm:$0xf]
    %v550 = vld [vmem:[#allocation7 + $0x12c] sm:$0xff]
    %v551 = vld [vmem:[#allocation7 + $0x134] sm:$0xf]
    %v552 = vld [vmem:[#allocation7 + $0x138] sm:$0xff]
    %v553 = vld [vmem:[#allocation7 + $0x140] sm:$0xf]
    %v554 = vld [vmem:[#allocation7 + $0x144] sm:$0xff]
    %v555 = vld [vmem:[#allocation7 + $0x14c] sm:$0xf]
    %v556 = vld [vmem:[#allocation7 + $0x150] sm:$0xff]
    %v557 = vld [vmem:[#allocation7 + $0x158] sm:$0xf]
    %v558 = vld [vmem:[#allocation7 + $0x15c] sm:$0xff]
    %v559 = vld [vmem:[#allocation7 + $0x164] sm:$0xf]
    %v560 = vld [vmem:[#allocation7 + $0x168] sm:$0xff]
    %v561 = vld [vmem:[#allocation7 + $0x170] sm:$0xf]
    %v562 = vld [vmem:[#allocation7 + $0x174] sm:$0xff]
    %v563 = vld [vmem:[#allocation7 + $0x17c] sm:$0xf]
    %v564 = vld [vmem:[#allocation7 + $0x180] sm:$0xff]
    %v565 = vld [vmem:[#allocation7 + $0x188] sm:$0xf]
    %v566 = vld [vmem:[#allocation7 + $0x18c] sm:$0xff]
    %v567 = vld [vmem:[#allocation7 + $0x194] sm:$0xf]
    %v568 = vld [vmem:[#allocation7 + $0x198] sm:$0xff]
    %v569 = vld [vmem:[#allocation7 + $0x1a0] sm:$0xf]
    %v570 = vld [vmem:[#allocation7 + $0x1a4] sm:$0xff]
    %v571 = vld [vmem:[#allocation7 + $0x1ac] sm:$0xf]
    %v572 = vld [vmem:[#allocation7 + $0x1b0] sm:$0xff]
    %v573 = vld [vmem:[#allocation7 + $0x1b8] sm:$0xf]
    %v574 = vld [vmem:[#allocation7 + $0x1bc] sm:$0xff]
    %v575 = vld [vmem:[#allocation7 + $0x1c4] sm:$0xf]
    %v576 = vld [vmem:[#allocation7 + $0x1c8] sm:$0xff]
    %v577 = vld [vmem:[#allocation7 + $0x1d0] sm:$0xf]
    %v578 = vld [vmem:[#allocation7 + $0x1d4] sm:$0xff]
    %v579 = vld [vmem:[#allocation7 + $0x1dc] sm:$0xf]
    %v580 = vld [vmem:[#allocation7 + $0x1e0] sm:$0xff]
    %v581 = vld [vmem:[#allocation7 + $0x1e8] sm:$0xf]
    %v582 = vld [vmem:[#allocation7 + $0x1ec] sm:$0xff]
    %v583 = vld [vmem:[#allocation7 + $0x1f4] sm:$0xf]
    %v584 = vld [vmem:[#allocation7 + $0x1f8] sm:$0xff]
    %v585 = vld [vmem:[#allocation7 + $0x200] sm:$0xf]
    %v586 = vld [vmem:[#allocation7 + $0x204] sm:$0xff]
    %v587 = vld [vmem:[#allocation7 + $0x20c] sm:$0xf]
    %v588 = vld [vmem:[#allocation7 + $0x210] sm:$0xff]
    %v589 = vld [vmem:[#allocation7 + $0x218] sm:$0xf]
    %v590 = vld [vmem:[#allocation7 + $0x21c] sm:$0xff]
    %v591 = vld [vmem:[#allocation7 + $0x224] sm:$0xf]
    %v592 = vld [vmem:[#allocation7 + $0x228] sm:$0xff]
    %v593 = vld [vmem:[#allocation7 + $0x230] sm:$0xf]
    %v594 = vld [vmem:[#allocation7 + $0x234] sm:$0xff]
    %v595 = vld [vmem:[#allocation7 + $0x23c] sm:$0xf]
    %s596 = scalar_lea.vmem %s5, 1
    %v597 = vld [vmem:[%s596] ss:$4 sm:$0x7]
    %v599 = vlaneseq
    %v600 = vshrl.u32 %v599, 7
    %v601 = vsub.s32 0, %v600
    %v602 = vrot.slane %v597, %v601
    %v603 = vlaneseq
    %v604 = vshrl.u32 %v603, 7
    %v605 = vsub.s32 1, %v604
    %v606 = vrot.slane %v597, %v605
    %v607 = vlaneseq
    %v608 = vshrl.u32 %v607, 7
    %v609 = vsub.s32 2, %v608
    %v610 = vrot.slane %v597, %v609
    %v710 = vunpack.c.l.b16 %v500
    %v711 = vunpack.c.h.b16 %v500
    %v712 = vunpack.c.l.b16 %v501
    %v713 = vunpack.c.l.b16 %v502
    %v714 = vunpack.c.h.b16 %v502
    %v715 = vunpack.c.l.b16 %v503
    %v716 = vunpack.c.l.b16 %v504
    %v717 = vunpack.c.h.b16 %v504
    %v718 = vunpack.c.l.b16 %v505
    %v719 = vunpack.c.l.b16 %v506
    %v720 = vunpack.c.h.b16 %v506
    %v721 = vunpack.c.l.b16 %v507
    %v722 = vunpack.c.l.b16 %v508
    %v723 = vunpack.c.h.b16 %v508
    %v724 = vunpack.c.l.b16 %v509
    %v725 = vunpack.c.l.b16 %v510
    %v726 = vunpack.c.h.b16 %v510
    %v727 = vunpack.c.l.b16 %v511
    %v728 = vunpack.c.l.b16 %v512
    %v729 = vunpack.c.h.b16 %v512
    %v730 = vunpack.c.l.b16 %v513
    %v731 = vunpack.c.l.b16 %v514
    %v732 = vunpack.c.h.b16 %v514
    %v733 = vunpack.c.l.b16 %v515
    %v734 = vunpack.c.l.b16 %v516
    %v735 = vunpack.c.h.b16 %v516
    %v736 = vunpack.c.l.b16 %v517
    %v737 = vunpack.c.l.b16 %v518
    %v738 = vunpack.c.h.b16 %v518
    %v739 = vunpack.c.l.b16 %v519
    %v740 = vunpack.c.l.b16 %v520
    %v741 = vunpack.c.h.b16 %v520
    %v742 = vunpack.c.l.b16 %v521
    %v743 = vunpack.c.l.b16 %v522
    %v744 = vunpack.c.h.b16 %v522
    %v745 = vunpack.c.l.b16 %v523
    %v746 = vunpack.c.l.b16 %v524
    %v747 = vunpack.c.h.b16 %v524
    %v748 = vunpack.c.l.b16 %v525
    %v749 = vunpack.c.l.b16 %v526
    %v750 = vunpack.c.h.b16 %v526
    %v751 = vunpack.c.l.b16 %v527
    %v752 = vunpack.c.l.b16 %v528
    %v753 = vunpack.c.h.b16 %v528
    %v754 = vunpack.c.l.b16 %v529
    %v755 = vunpack.c.l.b16 %v530
    %v756 = vunpack.c.h.b16 %v530
    %v757 = vunpack.c.l.b16 %v531
    %v758 = vunpack.c.l.b16 %v532
    %v759 = vunpack.c.h.b16 %v532
    %v760 = vunpack.c.l.b16 %v533
    %v761 = vunpack.c.l.b16 %v534
    %v762 = vunpack.c.h.b16 %v534
    %v763 = vunpack.c.l.b16 %v535
    %v764 = vunpack.c.l.b16 %v536
    %v765 = vunpack.c.h.b16 %v536
    %v766 = vunpack.c.l.b16 %v537
    %v767 = vunpack.c.l.b16 %v538
    %v768 = vunpack.c.h.b16 %v538
    %v769 = vunpack.c.l.b16 %v539
    %v770 = vunpack.c.l.b16 %v540
    %v771 = vunpack.c.h.b16 %v540
    %v772 = vunpack.c.l.b16 %v541
    %v773 = vunpack.c.l.b16 %v542
    %v774 = vunpack.c.h.b16 %v542
    %v775 = vunpack.c.l.b16 %v543
    %v776 = vunpack.c.l.b16 %v544
    %v777 = vunpack.c.h.b16 %v544
    %v778 = vunpack.c.l.b16 %v545
    %v779 = vunpack.c.l.b16 %v546
    %v780 = vunpack.c.h.b16 %v546
    %v781 = vunpack.c.l.b16 %v547
    %v782 = vunpack.c.l.b16 %v548
    %v783 = vunpack.c.h.b16 %v548
    %v784 = vunpack.c.l.b16 %v549
    %v785 = vunpack.c.l.b16 %v550
    %v786 = vunpack.c.h.b16 %v550
    %v787 = vunpack.c.l.b16 %v551
    %v788 = vunpack.c.l.b16 %v552
    %v789 = vunpack.c.h.b16 %v552
    %v790 = vunpack.c.l.b16 %v553
    %v791 = vunpack.c.l.b16 %v554
    %v792 = vunpack.c.h.b16 %v554
    %v793 = vunpack.c.l.b16 %v555
    %v794 = vunpack.c.l.b16 %v556
    %v795 = vunpack.c.h.b16 %v556
    %v796 = vunpack.c.l.b16 %v557
    %v797 = vunpack.c.l.b16 %v558
    %v798 = vunpack.c.h.b16 %v558
    %v799 = vunpack.c.l.b16 %v559
    %v800 = vunpack.c.l.b16 %v560
    %v801 = vunpack.c.h.b16 %v560
    %v802 = vunpack.c.l.b16 %v561
    %v803 = vunpack.c.l.b16 %v562
    %v804 = vunpack.c.h.b16 %v562
    %v805 = vunpack.c.l.b16 %v563
    %v806 = vunpack.c.l.b16 %v564
    %v807 = vunpack.c.h.b16 %v564
    %v808 = vunpack.c.l.b16 %v565
    %v809 = vunpack.c.l.b16 %v566
    %v810 = vunpack.c.h.b16 %v566
    %v811 = vunpack.c.l.b16 %v567
    %v812 = vunpack.c.l.b16 %v568
    %v813 = vunpack.c.h.b16 %v568
    %v814 = vunpack.c.l.b16 %v569
    %v815 = vunpack.c.l.b16 %v570
    %v816 = vunpack.c.h.b16 %v570
    %v817 = vunpack.c.l.b16 %v571
    %v818 = vunpack.c.l.b16 %v572
    %v819 = vunpack.c.h.b16 %v572
    %v820 = vunpack.c.l.b16 %v573
    %v821 = vunpack.c.l.b16 %v574
    %v822 = vunpack.c.h.b16 %v574
    %v823 = vunpack.c.l.b16 %v575
    %v824 = vunpack.c.l.b16 %v576
    %v825 = vunpack.c.h.b16 %v576
    %v826 = vunpack.c.l.b16 %v577
    %v827 = vunpack.c.l.b16 %v578
    %v828 = vunpack.c.h.b16 %v578
    %v829 = vunpack.c.l.b16 %v579
    %v830 = vunpack.c.l.b16 %v580
    %v831 = vunpack.c.h.b16 %v580
    %v832 = vunpack.c.l.b16 %v581
    %v833 = vunpack.c.l.b16 %v582
    %v834 = vunpack.c.h.b16 %v582
    %v835 = vunpack.c.l.b16 %v583
    %v836 = vunpack.c.l.b16 %v584
    %v837 = vunpack.c.h.b16 %v584
    %v838 = vunpack.c.l.b16 %v585
    %v839 = vunpack.c.l.b16 %v586
    %v840 = vunpack.c.h.b16 %v586
    %v841 = vunpack.c.l.b16 %v587
    %v842 = vunpack.c.l.b16 %v588
    %v843 = vunpack.c.h.b16 %v588
    %v844 = vunpack.c.l.b16 %v589
    %v845 = vunpack.c.l.b16 %v590
    %v846 = vunpack.c.h.b16 %v590
    %v847 = vunpack.c.l.b16 %v591
    %v848 = vunpack.c.l.b16 %v592
    %v849 = vunpack.c.h.b16 %v592
    %v850 = vunpack.c.l.b16 %v593
    %v851 = vunpack.c.l.b16 %v594
    %v852 = vunpack.c.h.b16 %v594
    %v853 = vunpack.c.l.b16 %v595
    %v854 = vpack.c.b16 %v713, %v710
    %v855 = vpack.c.b16 %v714, %v711
    %v856 = vpack.c.b16 %v715, %v712
    %v857 = vpack.c.b16 %v719, %v716
    %v858 = vpack.c.b16 %v720, %v717
    %v859 = vpack.c.b16 %v721, %v718
    %v860 = vpack.c.b16 %v725, %v722
    %v861 = vpack.c.b16 %v726, %v723
    %v862 = vpack.c.b16 %v727, %v724
    %v863 = vpack.c.b16 %v731, %v728
    %v864 = vpack.c.b16 %v732, %v729
    %v865 = vpack.c.b16 %v733, %v730
    %v866 = vpack.c.b16 %v737, %v734
    %v867 = vpack.c.b16 %v738, %v735
    %v868 = vpack.c.b16 %v739, %v736
    %v869 = vpack.c.b16 %v743, %v740
    %v870 = vpack.c.b16 %v744, %v741
    %v871 = vpack.c.b16 %v745, %v742
    %v872 = vpack.c.b16 %v749, %v746
    %v873 = vpack.c.b16 %v750, %v747
    %v874 = vpack.c.b16 %v751, %v748
    %v875 = vpack.c.b16 %v755, %v752
    %v876 = vpack.c.b16 %v756, %v753
    %v877 = vpack.c.b16 %v757, %v754
    %v878 = vpack.c.b16 %v761, %v758
    %v879 = vpack.c.b16 %v762, %v759
    %v880 = vpack.c.b16 %v763, %v760
    %v881 = vpack.c.b16 %v767, %v764
    %v882 = vpack.c.b16 %v768, %v765
    %v883 = vpack.c.b16 %v769, %v766
    %v884 = vpack.c.b16 %v773, %v770
    %v885 = vpack.c.b16 %v774, %v771
    %v886 = vpack.c.b16 %v775, %v772
    %v887 = vpack.c.b16 %v779, %v776
    %v888 = vpack.c.b16 %v780, %v777
    %v889 = vpack.c.b16 %v781, %v778
    %v890 = vpack.c.b16 %v785, %v782
    %v891 = vpack.c.b16 %v786, %v783
    %v892 = vpack.c.b16 %v787, %v784
    %v893 = vpack.c.b16 %v791, %v788
    %v894 = vpack.c.b16 %v792, %v789
    %v895 = vpack.c.b16 %v793, %v790
    %v896 = vpack.c.b16 %v797, %v794
    %v897 = vpack.c.b16 %v798, %v795
    %v898 = vpack.c.b16 %v799, %v796
    %v899 = vpack.c.b16 %v803, %v800
    %v900 = vpack.c.b16 %v804, %v801
    %v901 = vpack.c.b16 %v805, %v802
    %v902 = vpack.c.b16 %v809, %v806
    %v903 = vpack.c.b16 %v810, %v807
    %v904 = vpack.c.b16 %v811, %v808
    %v905 = vpack.c.b16 %v815, %v812
    %v906 = vpack.c.b16 %v816, %v813
    %v907 = vpack.c.b16 %v817, %v814
    %v908 = vpack.c.b16 %v821, %v818
    %v909 = vpack.c.b16 %v822, %v819
    %v910 = vpack.c.b16 %v823, %v820
    %v911 = vpack.c.b16 %v827, %v824
    %v912 = vpack.c.b16 %v828, %v825
    %v913 = vpack.c.b16 %v829, %v826
    %v914 = vpack.c.b16 %v833, %v830
    %v915 = vpack.c.b16 %v834, %v831
    %v916 = vpack.c.b16 %v835, %v832
    %v917 = vpack.c.b16 %v839, %v836
    %v918 = vpack.c.b16 %v840, %v837
    %v919 = vpack.c.b16 %v841, %v838
    %v920 = vpack.c.b16 %v845, %v842
    %v921 = vpack.c.b16 %v846, %v843
    %v922 = vpack.c.b16 %v847, %v844
    %v923 = vpack.c.b16 %v851, %v848
    %v924 = vpack.c.b16 %v852, %v849
    %v925 = vpack.c.b16 %v853, %v850
    %998 = vmatprep.subr.bf16.mxu0 %v855
    %999 = vmatpush1.bf16.msra.mxu0 %v854
    %1000 = vmatprep.subr.bf16.mxu0 %v858
    %1001 = vmatpush1.bf16.msra.mxu0 %v857
    %1002 = vmatprep.subr.bf16.mxu0 %v861
    %1003 = vmatpush1.bf16.msra.mxu0 %v860
    %1004 = vmatprep.subr.bf16.mxu0 %v864
    %1005 = vmatpush1.bf16.msra.mxu0 %v863
    %1006 = vmatprep.subr.bf16.mxu0 %v867
    %1007 = vmatpush1.bf16.msra.mxu0 %v866
    %1008 = vmatprep.subr.bf16.mxu0 %v870
    %1009 = vmatpush1.bf16.msra.mxu0 %v869
    %1010 = vmatprep.subr.bf16.mxu0 %v873
    %1011 = vmatpush1.bf16.msra.mxu0 %v872
    %1012 = vmatprep.subr.bf16.mxu0 %v876
    %1013 = vmatpush1.bf16.msra.mxu0 %v875
    %1014 = vmatprep.subr.bf16.mxu0 %v879
    %1015 = vmatpush1.bf16.msra.mxu0 %v878
    %1016 = vmatprep.subr.bf16.mxu0 %v882
    %1017 = vmatpush1.bf16.msra.mxu0 %v881
    %1018 = vmatprep.subr.bf16.mxu0 %v885
    %1019 = vmatpush1.bf16.msra.mxu0 %v884
    %1020 = vmatprep.subr.bf16.mxu0 %v888
    %1021 = vmatpush1.bf16.msra.mxu0 %v887
    %1022 = vmatprep.subr.bf16.mxu0 %v891
    %1023 = vmatpush1.bf16.msra.mxu0 %v890
    %1024 = vmatprep.subr.bf16.mxu0 %v894
    %1025 = vmatpush1.bf16.msra.mxu0 %v893
    %1026 = vmatprep.subr.bf16.mxu0 %v897
    %1027 = vmatpush1.bf16.msra.mxu0 %v896
    %1028 = vmatprep.subr.bf16.mxu0 %v900
    %1029 = vmatpush1.bf16.msra.mxu0 %v899
    %1030 = vmatprep.mubr.bf16.mxu0 %v498
    %1031 = vmatmul.mubr.bf16.gmra.mrb[0].mxu0 %v497
    %v1032 = vpop.f32.mrb[0].mxu0
    %v1033 = vadd.f32 %v602, %v1032
    %v1034 = vpop.f32.mrb[0].mxu0
    %v1035 = vadd.f32 %v606, %v1034
    %v1036 = vpop.f32.mrb[0].mxu0
    %v1037 = vpop.f32.mrb[0].mxu0
    %1038 = vdwg.mxu0
    %1039 = vmatprep.subr.bf16.mxu0 %v903
    %1040 = vmatpush1.bf16.msra.mxu0 %v902
    %1041 = vmatprep.subr.bf16.mxu0 %v906
    %1042 = vmatpush1.bf16.msra.mxu0 %v905
    %1043 = vmatprep.subr.bf16.mxu0 %v909
    %1044 = vmatpush1.bf16.msra.mxu0 %v908
    %1045 = vmatprep.subr.bf16.mxu0 %v912
    %1046 = vmatpush1.bf16.msra.mxu0 %v911
    %1047 = vmatprep.subr.bf16.mxu0 %v915
    %1048 = vmatpush1.bf16.msra.mxu0 %v914
    %1049 = vmatprep.subr.bf16.mxu0 %v918
    %1050 = vmatpush1.bf16.msra.mxu0 %v917
    %1051 = vmatprep.subr.bf16.mxu0 %v921
    %1052 = vmatpush1.bf16.msra.mxu0 %v920
    %1053 = vmatprep.subr.bf16.mxu0 %v924
    %1054 = vmatpush1.bf16.msra.mxu0 %v923
    %1055 = vmatprep.subr.bf16.mxu0 0
    %1056 = vmatpush1.bf16.msra.mxu0 0
    %1057 = vmatprep.subr.bf16.mxu0 0
    %1058 = vmatpush1.bf16.msra.mxu0 0
    %1059 = vmatprep.subr.bf16.mxu0 0
    %1060 = vmatpush1.bf16.msra.mxu0 0
    %1061 = vmatprep.subr.bf16.mxu0 0
    %1062 = vmatpush1.bf16.msra.mxu0 0
    %1063 = vmatprep.subr.bf16.mxu0 0
    %1064 = vmatpush1.bf16.msra.mxu0 0
    %1065 = vmatprep.subr.bf16.mxu0 0
    %1066 = vmatpush1.bf16.msra.mxu0 0
    %1067 = vmatprep.subr.bf16.mxu0 0
    %1068 = vmatpush1.bf16.msra.mxu0 0
    %1069 = vmatprep.subr.bf16.mxu0 0
    %1070 = vmatpush1.bf16.msra.mxu0 0
    %1071 = vmatprep.mubr.bf16.mxu0 0
    %1072 = vmatmul.mubr.bf16.gmra.mrb[0].mxu0 %v499
    %v1073 = vpop.f32.mrb[0].mxu0
    %v1074 = vadd.f32 %v1033, %v1073
    %v1075 = vpop.f32.mrb[0].mxu0
    %v1076 = vadd.f32 %v1035, %v1075
    %v1077 = vpop.f32.mrb[0].mxu0
    %v1078 = vpop.f32.mrb[0].mxu0
    %1079 = vdwg.mxu0
    %1080 = vmatprep.subr.bf16.mxu0 0
    %1081 = vmatpush1.bf16.msra.mxu0 %v856
    %1082 = vmatprep.subr.bf16.mxu0 0
    %1083 = vmatpush1.bf16.msra.mxu0 %v859
    %1084 = vmatprep.subr.bf16.mxu0 0
    %1085 = vmatpush1.bf16.msra.mxu0 %v862
    %1086 = vmatprep.subr.bf16.mxu0 0
    %1087 = vmatpush1.bf16.msra.mxu0 %v865
    %1088 = vmatprep.subr.bf16.mxu0 0
    %1089 = vmatpush1.bf16.msra.mxu0 %v868
    %1090 = vmatprep.subr.bf16.mxu0 0
    %1091 = vmatpush1.bf16.msra.mxu0 %v871
    %1092 = vmatprep.subr.bf16.mxu0 0
    %1093 = vmatpush1.bf16.msra.mxu0 %v874
    %1094 = vmatprep.subr.bf16.mxu0 0
    %1095 = vmatpush1.bf16.msra.mxu0 %v877
    %1096 = vmatprep.subr.bf16.mxu0 0
    %1097 = vmatpush1.bf16.msra.mxu0 %v880
    %1098 = vmatprep.subr.bf16.mxu0 0
    %1099 = vmatpush1.bf16.msra.mxu0 %v883
    %1100 = vmatprep.subr.bf16.mxu0 0
    %1101 = vmatpush1.bf16.msra.mxu0 %v886
    %1102 = vmatprep.subr.bf16.mxu0 0
    %1103 = vmatpush1.bf16.msra.mxu0 %v889
    %1104 = vmatprep.subr.bf16.mxu0 0
    %1105 = vmatpush1.bf16.msra.mxu0 %v892
    %1106 = vmatprep.subr.bf16.mxu0 0
    %1107 = vmatpush1.bf16.msra.mxu0 %v895
    %1108 = vmatprep.subr.bf16.mxu0 0
    %1109 = vmatpush1.bf16.msra.mxu0 %v898
    %1110 = vmatprep.subr.bf16.mxu0 0
    %1111 = vmatpush1.bf16.msra.mxu0 %v901
    %1112 = vmatprep.mubr.bf16.mxu0 %v498
    %1113 = vmatmul.mubr.bf16.gmra.mrb[0].mxu0 %v497
    %v1114 = vpop.f32.mrb[0].mxu0
    %v1115 = vadd.f32 %v610, %v1114
    %v1116 = vpop.f32.mrb[0].mxu0
    %v1117 = vpop.f32.mrb[0].mxu0
    %v1118 = vpop.f32.mrb[0].mxu0
    %1119 = vdwg.mxu0
    %1120 = vmatprep.subr.bf16.mxu0 0
    %1121 = vmatpush1.bf16.msra.mxu0 %v904
    %1122 = vmatprep.subr.bf16.mxu0 0
    %1123 = vmatpush1.bf16.msra.mxu0 %v907
    %1124 = vmatprep.subr.bf16.mxu0 0
    %1125 = vmatpush1.bf16.msra.mxu0 %v910
    %1126 = vmatprep.subr.bf16.mxu0 0
    %1127 = vmatpush1.bf16.msra.mxu0 %v913
    %1128 = vmatprep.subr.bf16.mxu0 0
    %1129 = vmatpush1.bf16.msra.mxu0 %v916
    %1130 = vmatprep.subr.bf16.mxu0 0
    %1131 = vmatpush1.bf16.msra.mxu0 %v919
    %1132 = vmatprep.subr.bf16.mxu0 0
    %1133 = vmatpush1.bf16.msra.mxu0 %v922
    %1134 = vmatprep.subr.bf16.mxu0 0
    %1135 = vmatpush1.bf16.msra.mxu0 %v925
    %1136 = vmatprep.subr.bf16.mxu0 0
    %1137 = vmatpush1.bf16.msra.mxu0 0
    %1138 = vmatprep.subr.bf16.mxu0 0
    %1139 = vmatpush1.bf16.msra.mxu0 0
    %1140 = vmatprep.subr.bf16.mxu0 0
    %1141 = vmatpush1.bf16.msra.mxu0 0
    %1142 = vmatprep.subr.bf16.mxu0 0
    %1143 = vmatpush1.bf16.msra.mxu0 0
    %1144 = vmatprep.subr.bf16.mxu0 0
    %1145 = vmatpush1.bf16.msra.mxu0 0
    %1146 = vmatprep.subr.bf16.mxu0 0
    %1147 = vmatpush1.bf16.msra.mxu0 0
    %1148 = vmatprep.subr.bf16.mxu0 0
    %1149 = vmatpush1.bf16.msra.mxu0 0
    %1150 = vmatprep.subr.bf16.mxu0 0
    %1151 = vmatpush1.bf16.msra.mxu0 0
    %1152 = vmatprep.mubr.bf16.mxu0 0
    %1153 = vmatmul.mubr.bf16.gmra.mrb[0].mxu0 %v499
    %v1154 = vpop.f32.mrb[0].mxu0
    %v1155 = vadd.f32 %v1115, %v1154
    %v1156 = vpop.f32.mrb[0].mxu0
    %v1157 = vpop.f32.mrb[0].mxu0
    %v1158 = vpop.f32.mrb[0].mxu0
    %1159 = vdwg.mxu0
    %v1160 = vmax.f32 %v1074, 0.0
    %v1161 = vmax.f32 %v1076, 0.0
    %v1162 = vmax.f32 %v1155, 0.0
    %v1163 = vpack.c.bf16 %v1160, %v1160
    %v1164 = vpack.c.bf16 %v1161, %v1161
    %v1165 = vpack.c.bf16 %v1162, %v1162
    %v1166 = vld [vmem:[#allocation8] sm:$0xff]
    %v1167 = vld [vmem:[#allocation8 + $0x8] sm:$0xf]
    %v1168 = vld [vmem:[#allocation8 + $0xc] sm:$0xff]
    %v1169 = vld [vmem:[#allocation8 + $0x14] sm:$0xf]
    %v1170 = vld [vmem:[#allocation8 + $0x18] sm:$0xff]
    %v1171 = vld [vmem:[#allocation8 + $0x20] sm:$0xf]
    %v1172 = vld [vmem:[#allocation8 + $0x24] sm:$0xff]
    %v1173 = vld [vmem:[#allocation8 + $0x2c] sm:$0xf]
    %v1174 = vld [vmem:[#allocation8 + $0x30] sm:$0xff]
    %v1175 = vld [vmem:[#allocation8 + $0x38] sm:$0xf]
    %v1176 = vld [vmem:[#allocation8 + $0x3c] sm:$0xff]
    %v1177 = vld [vmem:[#allocation8 + $0x44] sm:$0xf]
    %v1178 = vld [vmem:[#allocation8 + $0x48] sm:$0xff]
    %v1179 = vld [vmem:[#allocation8 + $0x50] sm:$0xf]
    %v1180 = vld [vmem:[#allocation8 + $0x54] sm:$0xff]
    %v1181 = vld [vmem:[#allocation8 + $0x5c] sm:$0xf]
    %v1182 = vld [vmem:[#allocation8 + $0x60] sm:$0xff]
    %v1183 = vld [vmem:[#allocation8 + $0x68] sm:$0xf]
    %v1184 = vld [vmem:[#allocation8 + $0x6c] sm:$0xff]
    %v1185 = vld [vmem:[#allocation8 + $0x74] sm:$0xf]
    %v1186 = vld [vmem:[#allocation8 + $0x78] sm:$0xff]
    %v1187 = vld [vmem:[#allocation8 + $0x80] sm:$0xf]
    %v1188 = vld [vmem:[#allocation8 + $0x84] sm:$0xff]
    %v1189 = vld [vmem:[#allocation8 + $0x8c] sm:$0xf]
    %v1190 = vld [vmem:[#allocation8 + $0x90] sm:$0xff]
    %v1191 = vld [vmem:[#allocation8 + $0x98] sm:$0xf]
    %v1192 = vld [vmem:[#allocation8 + $0x9c] sm:$0xff]
    %v1193 = vld [vmem:[#allocation8 + $0xa4] sm:$0xf]
    %v1194 = vld [vmem:[#allocation8 + $0xa8] sm:$0xff]
    %v1195 = vld [vmem:[#allocation8 + $0xb0] sm:$0xf]
    %v1196 = vld [vmem:[#allocation8 + $0xb4] sm:$0xff]
    %v1197 = vld [vmem:[#allocation8 + $0xbc] sm:$0xf]
    %v1198 = vld [vmem:[#allocation8 + $0xc0] sm:$0xff]
    %v1199 = vld [vmem:[#allocation8 + $0xc8] sm:$0xf]
    %v1200 = vld [vmem:[#allocation8 + $0xcc] sm:$0xff]
    %v1201 = vld [vmem:[#allocation8 + $0xd4] sm:$0xf]
    %v1202 = vld [vmem:[#allocation8 + $0xd8] sm:$0xff]
    %v1203 = vld [vmem:[#allocation8 + $0xe0] sm:$0xf]
    %v1204 = vld [vmem:[#allocation8 + $0xe4] sm:$0xff]
    %v1205 = vld [vmem:[#allocation8 + $0xec] sm:$0xf]
    %v1206 = vld [vmem:[#allocation8 + $0xf0] sm:$0xff]
    %v1207 = vld [vmem:[#allocation8 + $0xf8] sm:$0xf]
    %v1208 = vld [vmem:[#allocation8 + $0xfc] sm:$0xff]
    %v1209 = vld [vmem:[#allocation8 + $0x104] sm:$0xf]
    %v1210 = vld [vmem:[#allocation8 + $0x108] sm:$0xff]
    %v1211 = vld [vmem:[#allocation8 + $0x110] sm:$0xf]
    %v1212 = vld [vmem:[#allocation8 + $0x114] sm:$0xff]
    %v1213 = vld [vmem:[#allocation8 + $0x11c] sm:$0xf]
    %v1214 = vld [vmem:[#allocation8 + $0x120] sm:$0xff]
    %v1215 = vld [vmem:[#allocation8 + $0x128] sm:$0xf]
    %v1216 = vld [vmem:[#allocation8 + $0x12c] sm:$0xff]
    %v1217 = vld [vmem:[#allocation8 + $0x134] sm:$0xf]
    %v1218 = vld [vmem:[#allocation8 + $0x138] sm:$0xff]
    %v1219 = vld [vmem:[#allocation8 + $0x140] sm:$0xf]
    %v1220 = vld [vmem:[#allocation8 + $0x144] sm:$0xff]
    %v1221 = vld [vmem:[#allocation8 + $0x14c] sm:$0xf]
    %v1222 = vld [vmem:[#allocation8 + $0x150] sm:$0xff]
    %v1223 = vld [vmem:[#allocation8 + $0x158] sm:$0xf]
    %v1224 = vld [vmem:[#allocation8 + $0x15c] sm:$0xff]
    %v1225 = vld [vmem:[#allocation8 + $0x164] sm:$0xf]
    %v1226 = vld [vmem:[#allocation8 + $0x168] sm:$0xff]
    %v1227 = vld [vmem:[#allocation8 + $0x170] sm:$0xf]
    %v1228 = vld [vmem:[#allocation8 + $0x174] sm:$0xff]
    %v1229 = vld [vmem:[#allocation8 + $0x17c] sm:$0xf]
    %v1230 = vld [vmem:[#allocation8 + $0x180] sm:$0xff]
    %v1231 = vld [vmem:[#allocation8 + $0x188] sm:$0xf]
    %v1232 = vld [vmem:[#allocation8 + $0x18c] sm:$0xff]
    %v1233 = vld [vmem:[#allocation8 + $0x194] sm:$0xf]
    %v1234 = vld [vmem:[#allocation8 + $0x198] sm:$0xff]
    %v1235 = vld [vmem:[#allocation8 + $0x1a0] sm:$0xf]
    %v1236 = vld [vmem:[#allocation8 + $0x1a4] sm:$0xff]
    %v1237 = vld [vmem:[#allocation8 + $0x1ac] sm:$0xf]
    %v1238 = vld [vmem:[#allocation8 + $0x1b0] sm:$0xff]
    %v1239 = vld [vmem:[#allocation8 + $0x1b8] sm:$0xf]
    %v1240 = vld [vmem:[#allocation8 + $0x1bc] sm:$0xff]
    %v1241 = vld [vmem:[#allocation8 + $0x1c4] sm:$0xf]
    %v1242 = vld [vmem:[#allocation8 + $0x1c8] sm:$0xff]
    %v1243 = vld [vmem:[#allocation8 + $0x1d0] sm:$0xf]
    %v1244 = vld [vmem:[#allocation8 + $0x1d4] sm:$0xff]
    %v1245 = vld [vmem:[#allocation8 + $0x1dc] sm:$0xf]
    %v1246 = vld [vmem:[#allocation8 + $0x1e0] sm:$0xff]
    %v1247 = vld [vmem:[#allocation8 + $0x1e8] sm:$0xf]
    %v1248 = vld [vmem:[#allocation8 + $0x1ec] sm:$0xff]
    %v1249 = vld [vmem:[#allocation8 + $0x1f4] sm:$0xf]
    %v1250 = vld [vmem:[#allocation8 + $0x1f8] sm:$0xff]
    %v1251 = vld [vmem:[#allocation8 + $0x200] sm:$0xf]
    %v1252 = vld [vmem:[#allocation8 + $0x204] sm:$0xff]
    %v1253 = vld [vmem:[#allocation8 + $0x20c] sm:$0xf]
    %v1254 = vld [vmem:[#allocation8 + $0x210] sm:$0xff]
    %v1255 = vld [vmem:[#allocation8 + $0x218] sm:$0xf]
    %v1256 = vld [vmem:[#allocation8 + $0x21c] sm:$0xff]
    %v1257 = vld [vmem:[#allocation8 + $0x224] sm:$0xf]
    %v1258 = vld [vmem:[#allocation8 + $0x228] sm:$0xff]
    %v1259 = vld [vmem:[#allocation8 + $0x230] sm:$0xf]
    %v1260 = vld [vmem:[#allocation8 + $0x234] sm:$0xff]
    %v1261 = vld [vmem:[#allocation8 + $0x23c] sm:$0xf]
    %s1262 = scalar_lea.vmem %s5, 2
    %v1263 = vld [vmem:[%s1262] ss:$4 sm:$0x7]
    %v1265 = vlaneseq
    %v1266 = vshrl.u32 %v1265, 7
    %v1267 = vsub.s32 0, %v1266
    %v1268 = vrot.slane %v1263, %v1267
    %v1269 = vlaneseq
    %v1270 = vshrl.u32 %v1269, 7
    %v1271 = vsub.s32 1, %v1270
    %v1272 = vrot.slane %v1263, %v1271
    %v1273 = vlaneseq
    %v1274 = vshrl.u32 %v1273, 7
    %v1275 = vsub.s32 2, %v1274
    %v1276 = vrot.slane %v1263, %v1275
    %v1376 = vunpack.c.l.b16 %v1166
    %v1377 = vunpack.c.h.b16 %v1166
    %v1378 = vunpack.c.l.b16 %v1167
    %v1379 = vunpack.c.l.b16 %v1168
    %v1380 = vunpack.c.h.b16 %v1168
    %v1381 = vunpack.c.l.b16 %v1169
    %v1382 = vunpack.c.l.b16 %v1170
    %v1383 = vunpack.c.h.b16 %v1170
    %v1384 = vunpack.c.l.b16 %v1171
    %v1385 = vunpack.c.l.b16 %v1172
    %v1386 = vunpack.c.h.b16 %v1172
    %v1387 = vunpack.c.l.b16 %v1173
    %v1388 = vunpack.c.l.b16 %v1174
    %v1389 = vunpack.c.h.b16 %v1174
    %v1390 = vunpack.c.l.b16 %v1175
    %v1391 = vunpack.c.l.b16 %v1176
    %v1392 = vunpack.c.h.b16 %v1176
    %v1393 = vunpack.c.l.b16 %v1177
    %v1394 = vunpack.c.l.b16 %v1178
    %v1395 = vunpack.c.h.b16 %v1178
    %v1396 = vunpack.c.l.b16 %v1179
    %v1397 = vunpack.c.l.b16 %v1180
    %v1398 = vunpack.c.h.b16 %v1180
    %v1399 = vunpack.c.l.b16 %v1181
    %v1400 = vunpack.c.l.b16 %v1182
    %v1401 = vunpack.c.h.b16 %v1182
    %v1402 = vunpack.c.l.b16 %v1183
    %v1403 = vunpack.c.l.b16 %v1184
    %v1404 = vunpack.c.h.b16 %v1184
    %v1405 = vunpack.c.l.b16 %v1185
    %v1406 = vunpack.c.l.b16 %v1186
    %v1407 = vunpack.c.h.b16 %v1186
    %v1408 = vunpack.c.l.b16 %v1187
    %v1409 = vunpack.c.l.b16 %v1188
    %v1410 = vunpack.c.h.b16 %v1188
    %v1411 = vunpack.c.l.b16 %v1189
    %v1412 = vunpack.c.l.b16 %v1190
    %v1413 = vunpack.c.h.b16 %v1190
    %v1414 = vunpack.c.l.b16 %v1191
    %v1415 = vunpack.c.l.b16 %v1192
    %v1416 = vunpack.c.h.b16 %v1192
    %v1417 = vunpack.c.l.b16 %v1193
    %v1418 = vunpack.c.l.b16 %v1194
    %v1419 = vunpack.c.h.b16 %v1194
    %v1420 = vunpack.c.l.b16 %v1195
    %v1421 = vunpack.c.l.b16 %v1196
    %v1422 = vunpack.c.h.b16 %v1196
    %v1423 = vunpack.c.l.b16 %v1197
    %v1424 = vunpack.c.l.b16 %v1198
    %v1425 = vunpack.c.h.b16 %v1198
    %v1426 = vunpack.c.l.b16 %v1199
    %v1427 = vunpack.c.l.b16 %v1200
    %v1428 = vunpack.c.h.b16 %v1200
    %v1429 = vunpack.c.l.b16 %v1201
    %v1430 = vunpack.c.l.b16 %v1202
    %v1431 = vunpack.c.h.b16 %v1202
    %v1432 = vunpack.c.l.b16 %v1203
    %v1433 = vunpack.c.l.b16 %v1204
    %v1434 = vunpack.c.h.b16 %v1204
    %v1435 = vunpack.c.l.b16 %v1205
    %v1436 = vunpack.c.l.b16 %v1206
    %v1437 = vunpack.c.h.b16 %v1206
    %v1438 = vunpack.c.l.b16 %v1207
    %v1439 = vunpack.c.l.b16 %v1208
    %v1440 = vunpack.c.h.b16 %v1208
    %v1441 = vunpack.c.l.b16 %v1209
    %v1442 = vunpack.c.l.b16 %v1210
    %v1443 = vunpack.c.h.b16 %v1210
    %v1444 = vunpack.c.l.b16 %v1211
    %v1445 = vunpack.c.l.b16 %v1212
    %v1446 = vunpack.c.h.b16 %v1212
    %v1447 = vunpack.c.l.b16 %v1213
    %v1448 = vunpack.c.l.b16 %v1214
    %v1449 = vunpack.c.h.b16 %v1214
    %v1450 = vunpack.c.l.b16 %v1215
    %v1451 = vunpack.c.l.b16 %v1216
    %v1452 = vunpack.c.h.b16 %v1216
    %v1453 = vunpack.c.l.b16 %v1217
    %v1454 = vunpack.c.l.b16 %v1218
    %v1455 = vunpack.c.h.b16 %v1218
    %v1456 = vunpack.c.l.b16 %v1219
    %v1457 = vunpack.c.l.b16 %v1220
    %v1458 = vunpack.c.h.b16 %v1220
    %v1459 = vunpack.c.l.b16 %v1221
    %v1460 = vunpack.c.l.b16 %v1222
    %v1461 = vunpack.c.h.b16 %v1222
    %v1462 = vunpack.c.l.b16 %v1223
    %v1463 = vunpack.c.l.b16 %v1224
    %v1464 = vunpack.c.h.b16 %v1224
    %v1465 = vunpack.c.l.b16 %v1225
    %v1466 = vunpack.c.l.b16 %v1226
    %v1467 = vunpack.c.h.b16 %v1226
    %v1468 = vunpack.c.l.b16 %v1227
    %v1469 = vunpack.c.l.b16 %v1228
    %v1470 = vunpack.c.h.b16 %v1228
    %v1471 = vunpack.c.l.b16 %v1229
    %v1472 = vunpack.c.l.b16 %v1230
    %v1473 = vunpack.c.h.b16 %v1230
    %v1474 = vunpack.c.l.b16 %v1231
    %v1475 = vunpack.c.l.b16 %v1232
    %v1476 = vunpack.c.h.b16 %v1232
    %v1477 = vunpack.c.l.b16 %v1233
    %v1478 = vunpack.c.l.b16 %v1234
    %v1479 = vunpack.c.h.b16 %v1234
    %v1480 = vunpack.c.l.b16 %v1235
    %v1481 = vunpack.c.l.b16 %v1236
    %v1482 = vunpack.c.h.b16 %v1236
    %v1483 = vunpack.c.l.b16 %v1237
    %v1484 = vunpack.c.l.b16 %v1238
    %v1485 = vunpack.c.h.b16 %v1238
    %v1486 = vunpack.c.l.b16 %v1239
    %v1487 = vunpack.c.l.b16 %v1240
    %v1488 = vunpack.c.h.b16 %v1240
    %v1489 = vunpack.c.l.b16 %v1241
    %v1490 = vunpack.c.l.b16 %v1242
    %v1491 = vunpack.c.h.b16 %v1242
    %v1492 = vunpack.c.l.b16 %v1243
    %v1493 = vunpack.c.l.b16 %v1244
    %v1494 = vunpack.c.h.b16 %v1244
    %v1495 = vunpack.c.l.b16 %v1245
    %v1496 = vunpack.c.l.b16 %v1246
    %v1497 = vunpack.c.h.b16 %v1246
    %v1498 = vunpack.c.l.b16 %v1247
    %v1499 = vunpack.c.l.b16 %v1248
    %v1500 = vunpack.c.h.b16 %v1248
    %v1501 = vunpack.c.l.b16 %v1249
    %v1502 = vunpack.c.l.b16 %v1250
    %v1503 = vunpack.c.h.b16 %v1250
    %v1504 = vunpack.c.l.b16 %v1251
    %v1505 = vunpack.c.l.b16 %v1252
    %v1506 = vunpack.c.h.b16 %v1252
    %v1507 = vunpack.c.l.b16 %v1253
    %v1508 = vunpack.c.l.b16 %v1254
    %v1509 = vunpack.c.h.b16 %v1254
    %v1510 = vunpack.c.l.b16 %v1255
    %v1511 = vunpack.c.l.b16 %v1256
    %v1512 = vunpack.c.h.b16 %v1256
    %v1513 = vunpack.c.l.b16 %v1257
    %v1514 = vunpack.c.l.b16 %v1258
    %v1515 = vunpack.c.h.b16 %v1258
    %v1516 = vunpack.c.l.b16 %v1259
    %v1517 = vunpack.c.l.b16 %v1260
    %v1518 = vunpack.c.h.b16 %v1260
    %v1519 = vunpack.c.l.b16 %v1261
    %v1520 = vpack.c.b16 %v1379, %v1376
    %v1521 = vpack.c.b16 %v1380, %v1377
    %v1522 = vpack.c.b16 %v1381, %v1378
    %v1523 = vpack.c.b16 %v1385, %v1382
    %v1524 = vpack.c.b16 %v1386, %v1383
    %v1525 = vpack.c.b16 %v1387, %v1384
    %v1526 = vpack.c.b16 %v1391, %v1388
    %v1527 = vpack.c.b16 %v1392, %v1389
    %v1528 = vpack.c.b16 %v1393, %v1390
    %v1529 = vpack.c.b16 %v1397, %v1394
    %v1530 = vpack.c.b16 %v1398, %v1395
    %v1531 = vpack.c.b16 %v1399, %v1396
    %v1532 = vpack.c.b16 %v1403, %v1400
    %v1533 = vpack.c.b16 %v1404, %v1401
    %v1534 = vpack.c.b16 %v1405, %v1402
    %v1535 = vpack.c.b16 %v1409, %v1406
    %v1536 = vpack.c.b16 %v1410, %v1407
    %v1537 = vpack.c.b16 %v1411, %v1408
    %v1538 = vpack.c.b16 %v1415, %v1412
    %v1539 = vpack.c.b16 %v1416, %v1413
    %v1540 = vpack.c.b16 %v1417, %v1414
    %v1541 = vpack.c.b16 %v1421, %v1418
    %v1542 = vpack.c.b16 %v1422, %v1419
    %v1543 = vpack.c.b16 %v1423, %v1420
    %v1544 = vpack.c.b16 %v1427, %v1424
    %v1545 = vpack.c.b16 %v1428, %v1425
    %v1546 = vpack.c.b16 %v1429, %v1426
    %v1547 = vpack.c.b16 %v1433, %v1430
    %v1548 = vpack.c.b16 %v1434, %v1431
    %v1549 = vpack.c.b16 %v1435, %v1432
    %v1550 = vpack.c.b16 %v1439, %v1436
    %v1551 = vpack.c.b16 %v1440, %v1437
    %v1552 = vpack.c.b16 %v1441, %v1438
    %v1553 = vpack.c.b16 %v1445, %v1442
    %v1554 = vpack.c.b16 %v1446, %v1443
    %v1555 = vpack.c.b16 %v1447, %v1444
    %v1556 = vpack.c.b16 %v1451, %v1448
    %v1557 = vpack.c.b16 %v1452, %v1449
    %v1558 = vpack.c.b16 %v1453, %v1450
    %v1559 = vpack.c.b16 %v1457, %v1454
    %v1560 = vpack.c.b16 %v1458, %v1455
    %v1561 = vpack.c.b16 %v1459, %v1456
    %v1562 = vpack.c.b16 %v1463, %v1460
    %v1563 = vpack.c.b16 %v1464, %v1461
    %v1564 = vpack.c.b16 %v1465, %v1462
    %v1565 = vpack.c.b16 %v1469, %v1466
    %v1566 = vpack.c.b16 %v1470, %v1467
    %v1567 = vpack.c.b16 %v1471, %v1468
    %v1568 = vpack.c.b16 %v1475, %v1472
    %v1569 = vpack.c.b16 %v1476, %v1473
    %v1570 = vpack.c.b16 %v1477, %v1474
    %v1571 = vpack.c.b16 %v1481, %v1478
    %v1572 = vpack.c.b16 %v1482, %v1479
    %v1573 = vpack.c.b16 %v1483, %v1480
    %v1574 = vpack.c.b16 %v1487, %v1484
    %v1575 = vpack.c.b16 %v1488, %v1485
    %v1576 = vpack.c.b16 %v1489, %v1486
    %v1577 = vpack.c.b16 %v1493, %v1490
    %v1578 = vpack.c.b16 %v1494, %v1491
    %v1579 = vpack.c.b16 %v1495, %v1492
    %v1580 = vpack.c.b16 %v1499, %v1496
    %v1581 = vpack.c.b16 %v1500, %v1497
    %v1582 = vpack.c.b16 %v1501, %v1498
    %v1583 = vpack.c.b16 %v1505, %v1502
    %v1584 = vpack.c.b16 %v1506, %v1503
    %v1585 = vpack.c.b16 %v1507, %v1504
    %v1586 = vpack.c.b16 %v1511, %v1508
    %v1587 = vpack.c.b16 %v1512, %v1509
    %v1588 = vpack.c.b16 %v1513, %v1510
    %v1589 = vpack.c.b16 %v1517, %v1514
    %v1590 = vpack.c.b16 %v1518, %v1515
    %v1591 = vpack.c.b16 %v1519, %v1516
    %1664 = vmatprep.subr.bf16.mxu0 %v1521
    %1665 = vmatpush1.bf16.msra.mxu0 %v1520
    %1666 = vmatprep.subr.bf16.mxu0 %v1524
    %1667 = vmatpush1.bf16.msra.mxu0 %v1523
    %1668 = vmatprep.subr.bf16.mxu0 %v1527
    %1669 = vmatpush1.bf16.msra.mxu0 %v1526
    %1670 = vmatprep.subr.bf16.mxu0 %v1530
    %1671 = vmatpush1.bf16.msra.mxu0 %v1529
    %1672 = vmatprep.subr.bf16.mxu0 %v1533
    %1673 = vmatpush1.bf16.msra.mxu0 %v1532
    %1674 = vmatprep.subr.bf16.mxu0 %v1536
    %1675 = vmatpush1.bf16.msra.mxu0 %v1535
    %1676 = vmatprep.subr.bf16.mxu0 %v1539
    %1677 = vmatpush1.bf16.msra.mxu0 %v1538
    %1678 = vmatprep.subr.bf16.mxu0 %v1542
    %1679 = vmatpush1.bf16.msra.mxu0 %v1541
    %1680 = vmatprep.subr.bf16.mxu0 %v1545
    %1681 = vmatpush1.bf16.msra.mxu0 %v1544
    %1682 = vmatprep.subr.bf16.mxu0 %v1548
    %1683 = vmatpush1.bf16.msra.mxu0 %v1547
    %1684 = vmatprep.subr.bf16.mxu0 %v1551
    %1685 = vmatpush1.bf16.msra.mxu0 %v1550
    %1686 = vmatprep.subr.bf16.mxu0 %v1554
    %1687 = vmatpush1.bf16.msra.mxu0 %v1553
    %1688 = vmatprep.subr.bf16.mxu0 %v1557
    %1689 = vmatpush1.bf16.msra.mxu0 %v1556
    %1690 = vmatprep.subr.bf16.mxu0 %v1560
    %1691 = vmatpush1.bf16.msra.mxu0 %v1559
    %1692 = vmatprep.subr.bf16.mxu0 %v1563
    %1693 = vmatpush1.bf16.msra.mxu0 %v1562
    %1694 = vmatprep.subr.bf16.mxu0 %v1566
    %1695 = vmatpush1.bf16.msra.mxu0 %v1565
    %1696 = vmatprep.mubr.bf16.mxu0 %v1164
    %1697 = vmatmul.mubr.bf16.gmra.mrb[0].mxu0 %v1163
    %v1698 = vpop.f32.mrb[0].mxu0
    %v1699 = vadd.f32 %v1268, %v1698
    %v1700 = vpop.f32.mrb[0].mxu0
    %v1701 = vadd.f32 %v1272, %v1700
    %v1702 = vpop.f32.mrb[0].mxu0
    %v1703 = vpop.f32.mrb[0].mxu0
    %1704 = vdwg.mxu0
    %1705 = vmatprep.subr.bf16.mxu0 %v1569
    %1706 = vmatpush1.bf16.msra.mxu0 %v1568
    %1707 = vmatprep.subr.bf16.mxu0 %v1572
    %1708 = vmatpush1.bf16.msra.mxu0 %v1571
    %1709 = vmatprep.subr.bf16.mxu0 %v1575
    %1710 = vmatpush1.bf16.msra.mxu0 %v1574
    %1711 = vmatprep.subr.bf16.mxu0 %v1578
    %1712 = vmatpush1.bf16.msra.mxu0 %v1577
    %1713 = vmatprep.subr.bf16.mxu0 %v1581
    %1714 = vmatpush1.bf16.msra.mxu0 %v1580
    %1715 = vmatprep.subr.bf16.mxu0 %v1584
    %1716 = vmatpush1.bf16.msra.mxu0 %v1583
    %1717 = vmatprep.subr.bf16.mxu0 %v1587
    %1718 = vmatpush1.bf16.msra.mxu0 %v1586
    %1719 = vmatprep.subr.bf16.mxu0 %v1590
    %1720 = vmatpush1.bf16.msra.mxu0 %v1589
    %1721 = vmatprep.subr.bf16.mxu0 0
    %1722 = vmatpush1.bf16.msra.mxu0 0
    %1723 = vmatprep.subr.bf16.mxu0 0
    %1724 = vmatpush1.bf16.msra.mxu0 0
    %1725 = vmatprep.subr.bf16.mxu0 0
    %1726 = vmatpush1.bf16.msra.mxu0 0
    %1727 = vmatprep.subr.bf16.mxu0 0
    %1728 = vmatpush1.bf16.msra.mxu0 0
    %1729 = vmatprep.subr.bf16.mxu0 0
    %1730 = vmatpush1.bf16.msra.mxu0 0
    %1731 = vmatprep.subr.bf16.mxu0 0
    %1732 = vmatpush1.bf16.msra.mxu0 0
    %1733 = vmatprep.subr.bf16.mxu0 0
    %1734 = vmatpush1.bf16.msra.mxu0 0
    %1735 = vmatprep.subr.bf16.mxu0 0
    %1736 = vmatpush1.bf16.msra.mxu0 0
    %1737 = vmatprep.mubr.bf16.mxu0 0
    %1738 = vmatmul.mubr.bf16.gmra.mrb[0].mxu0 %v1165
    %v1739 = vpop.f32.mrb[0].mxu0
    %v1740 = vadd.f32 %v1699, %v1739
    %v1741 = vpop.f32.mrb[0].mxu0
    %v1742 = vadd.f32 %v1701, %v1741
    %v1743 = vpop.f32.mrb[0].mxu0
    %v1744 = vpop.f32.mrb[0].mxu0
    %1745 = vdwg.mxu0
    %1746 = vmatprep.subr.bf16.mxu0 0
    %1747 = vmatpush1.bf16.msra.mxu0 %v1522
    %1748 = vmatprep.subr.bf16.mxu0 0
    %1749 = vmatpush1.bf16.msra.mxu0 %v1525
    %1750 = vmatprep.subr.bf16.mxu0 0
    %1751 = vmatpush1.bf16.msra.mxu0 %v1528
    %1752 = vmatprep.subr.bf16.mxu0 0
    %1753 = vmatpush1.bf16.msra.mxu0 %v1531
    %1754 = vmatprep.subr.bf16.mxu0 0
    %1755 = vmatpush1.bf16.msra.mxu0 %v1534
    %1756 = vmatprep.subr.bf16.mxu0 0
    %1757 = vmatpush1.bf16.msra.mxu0 %v1537
    %1758 = vmatprep.subr.bf16.mxu0 0
    %1759 = vmatpush1.bf16.msra.mxu0 %v1540
    %1760 = vmatprep.subr.bf16.mxu0 0
    %1761 = vmatpush1.bf16.msra.mxu0 %v1543
    %1762 = vmatprep.subr.bf16.mxu0 0
    %1763 = vmatpush1.bf16.msra.mxu0 %v1546
    %1764 = vmatprep.subr.bf16.mxu0 0
    %1765 = vmatpush1.bf16.msra.mxu0 %v1549
    %1766 = vmatprep.subr.bf16.mxu0 0
    %1767 = vmatpush1.bf16.msra.mxu0 %v1552
    %1768 = vmatprep.subr.bf16.mxu0 0
    %1769 = vmatpush1.bf16.msra.mxu0 %v1555
    %1770 = vmatprep.subr.bf16.mxu0 0
    %1771 = vmatpush1.bf16.msra.mxu0 %v1558
    %1772 = vmatprep.subr.bf16.mxu0 0
    %1773 = vmatpush1.bf16.msra.mxu0 %v1561
    %1774 = vmatprep.subr.bf16.mxu0 0
    %1775 = vmatpush1.bf16.msra.mxu0 %v1564
    %1776 = vmatprep.subr.bf16.mxu0 0
    %1777 = vmatpush1.bf16.msra.mxu0 %v1567
    %1778 = vmatprep.mubr.bf16.mxu0 %v1164
    %1779 = vmatmul.mubr.bf16.gmra.mrb[0].mxu0 %v1163
    %v1780 = vpop.f32.mrb[0].mxu0
    %v1781 = vadd.f32 %v1276, %v1780
    %v1782 = vpop.f32.mrb[0].mxu0
    %v1783 = vpop.f32.mrb[0].mxu0
    %v1784 = vpop.f32.mrb[0].mxu0
    %1785 = vdwg.mxu0
    %1786 = vmatprep.subr.bf16.mxu0 0
    %1787 = vmatpush1.bf16.msra.mxu0 %v1570
    %1788 = vmatprep.subr.bf16.mxu0 0
    %1789 = vmatpush1.bf16.msra.mxu0 %v1573
    %1790 = vmatprep.subr.bf16.mxu0 0
    %1791 = vmatpush1.bf16.msra.mxu0 %v1576
    %1792 = vmatprep.subr.bf16.mxu0 0
    %1793 = vmatpush1.bf16.msra.mxu0 %v1579
    %1794 = vmatprep.subr.bf16.mxu0 0
    %1795 = vmatpush1.bf16.msra.mxu0 %v1582
    %1796 = vmatprep.subr.bf16.mxu0 0
    %1797 = vmatpush1.bf16.msra.mxu0 %v1585
    %1798 = vmatprep.subr.bf16.mxu0 0
    %1799 = vmatpush1.bf16.msra.mxu0 %v1588
    %1800 = vmatprep.subr.bf16.mxu0 0
    %1801 = vmatpush1.bf16.msra.mxu0 %v1591
    %1802 = vmatprep.subr.bf16.mxu0 0
    %1803 = vmatpush1.bf16.msra.mxu0 0
    %1804 = vmatprep.subr.bf16.mxu0 0
    %1805 = vmatpush1.bf16.msra.mxu0 0
    %1806 = vmatprep.subr.bf16.mxu0 0
    %1807 = vmatpush1.bf16.msra.mxu0 0
    %1808 = vmatprep.subr.bf16.mxu0 0
    %1809 = vmatpush1.bf16.msra.mxu0 0
    %1810 = vmatprep.subr.bf16.mxu0 0
    %1811 = vmatpush1.bf16.msra.mxu0 0
    %1812 = vmatprep.subr.bf16.mxu0 0
    %1813 = vmatpush1.bf16.msra.mxu0 0
    %1814 = vmatprep.subr.bf16.mxu0 0
    %1815 = vmatpush1.bf16.msra.mxu0 0
    %1816 = vmatprep.subr.bf16.mxu0 0
    %1817 = vmatpush1.bf16.msra.mxu0 0
    %1818 = vmatprep.mubr.bf16.mxu0 0
    %1819 = vmatmul.mubr.bf16.gmra.mrb[0].mxu0 %v1165
    %v1820 = vpop.f32.mrb[0].mxu0
    %v1821 = vadd.f32 %v1781, %v1820
    %v1822 = vpop.f32.mrb[0].mxu0
    %v1823 = vpop.f32.mrb[0].mxu0
    %v1824 = vpop.f32.mrb[0].mxu0
    %1825 = vdwg.mxu0
    %v1826 = vmax.f32 %v1740, 0.0
    %v1827 = vmax.f32 %v1742, 0.0
    %v1828 = vmax.f32 %v1821, 0.0
    %v1829 = vpack.c.bf16 %v1826, %v1826
    %v1830 = vpack.c.bf16 %v1827, %v1827
    %v1831 = vpack.c.bf16 %v1828, %v1828
    %v1832 = vld [vmem:[#allocation10] sm:$0xf]
    %v1833 = vld [vmem:[#allocation10 + $0x4] sm:$0xf]
    %v1834 = vld [vmem:[#allocation10 + $0x8] sm:$0xf]
    %v1835 = vld [vmem:[#allocation10 + $0xc] sm:$0xf]
    %v1836 = vld [vmem:[#allocation10 + $0x10] sm:$0xf]
    %v1837 = vld [vmem:[#allocation10 + $0x14] sm:$0xf]
    %v1838 = vld [vmem:[#allocation10 + $0x18] sm:$0xf]
    %v1839 = vld [vmem:[#allocation10 + $0x1c] sm:$0xf]
    %v1840 = vld [vmem:[#allocation10 + $0x20] sm:$0xf]
    %v1841 = vld [vmem:[#allocation10 + $0x24] sm:$0xf]
    %v1842 = vld [vmem:[#allocation10 + $0x28] sm:$0xf]
    %v1843 = vld [vmem:[#allocation10 + $0x2c] sm:$0xf]
    %v1844 = vld [vmem:[#allocation10 + $0x30] sm:$0xf]
    %v1845 = vld [vmem:[#allocation10 + $0x34] sm:$0xf]
    %v1846 = vld [vmem:[#allocation10 + $0x38] sm:$0xf]
    %v1847 = vld [vmem:[#allocation10 + $0x3c] sm:$0xf]
    %v1848 = vld [vmem:[#allocation10 + $0x40] sm:$0xf]
    %v1849 = vld [vmem:[#allocation10 + $0x44] sm:$0xf]
    %v1850 = vld [vmem:[#allocation10 + $0x48] sm:$0xf]
    %v1851 = vld [vmem:[#allocation10 + $0x4c] sm:$0xf]
    %v1852 = vld [vmem:[#allocation10 + $0x50] sm:$0xf]
    %v1853 = vld [vmem:[#allocation10 + $0x54] sm:$0xf]
    %v1854 = vld [vmem:[#allocation10 + $0x58] sm:$0xf]
    %v1855 = vld [vmem:[#allocation10 + $0x5c] sm:$0xf]
    %v1856 = vld [vmem:[#allocation10 + $0x60] sm:$0xf]
    %v1857 = vld [vmem:[#allocation10 + $0x64] sm:$0xf]
    %v1858 = vld [vmem:[#allocation10 + $0x68] sm:$0xf]
    %v1859 = vld [vmem:[#allocation10 + $0x6c] sm:$0xf]
    %v1860 = vld [vmem:[#allocation10 + $0x70] sm:$0xf]
    %v1861 = vld [vmem:[#allocation10 + $0x74] sm:$0xf]
    %v1862 = vld [vmem:[#allocation10 + $0x78] sm:$0xf]
    %v1863 = vld [vmem:[#allocation10 + $0x7c] sm:$0xf]
    %v1864 = vld [vmem:[#allocation10 + $0x80] sm:$0xf]
    %v1865 = vld [vmem:[#allocation10 + $0x84] sm:$0xf]
    %v1866 = vld [vmem:[#allocation10 + $0x88] sm:$0xf]
    %v1867 = vld [vmem:[#allocation10 + $0x8c] sm:$0xf]
    %v1868 = vld [vmem:[#allocation10 + $0x90] sm:$0xf]
    %v1869 = vld [vmem:[#allocation10 + $0x94] sm:$0xf]
    %v1870 = vld [vmem:[#allocation10 + $0x98] sm:$0xf]
    %v1871 = vld [vmem:[#allocation10 + $0x9c] sm:$0xf]
    %v1872 = vld [vmem:[#allocation10 + $0xa0] sm:$0xf]
    %v1873 = vld [vmem:[#allocation10 + $0xa4] sm:$0xf]
    %v1874 = vld [vmem:[#allocation10 + $0xa8] sm:$0xf]
    %v1875 = vld [vmem:[#allocation10 + $0xac] sm:$0xf]
    %v1876 = vld [vmem:[#allocation10 + $0xb0] sm:$0xf]
    %v1877 = vld [vmem:[#allocation10 + $0xb4] sm:$0xf]
    %v1878 = vld [vmem:[#allocation10 + $0xb8] sm:$0xf]
    %v1879 = vld [vmem:[#allocation10 + $0xbc] sm:$0xf]
    %v1880 = vld [vmem:[%s5 + $0x3] sm:$0x1]
    %v1881 = vlaneseq
    %v1882 = vshrl.u32 %v1881, 7
    %v1883 = vsub.s32 0, %v1882
    %v1884 = vrot.slane %v1880, %v1883
    %v1933 = vunpack.c.l.b16 %v1832
    %v1934 = vunpack.c.l.b16 %v1833
    %v1935 = vunpack.c.l.b16 %v1834
    %v1936 = vunpack.c.l.b16 %v1835
    %v1937 = vunpack.c.l.b16 %v1836
    %v1938 = vunpack.c.l.b16 %v1837
    %v1939 = vunpack.c.l.b16 %v1838
    %v1940 = vunpack.c.l.b16 %v1839
    %v1941 = vunpack.c.l.b16 %v1840
    %v1942 = vunpack.c.l.b16 %v1841
    %v1943 = vunpack.c.l.b16 %v1842
    %v1944 = vunpack.c.l.b16 %v1843
    %v1945 = vunpack.c.l.b16 %v1844
    %v1946 = vunpack.c.l.b16 %v1845
    %v1947 = vunpack.c.l.b16 %v1846
    %v1948 = vunpack.c.l.b16 %v1847
    %v1949 = vunpack.c.l.b16 %v1848
    %v1950 = vunpack.c.l.b16 %v1849
    %v1951 = vunpack.c.l.b16 %v1850
    %v1952 = vunpack.c.l.b16 %v1851
    %v1953 = vunpack.c.l.b16 %v1852
    %v1954 = vunpack.c.l.b16 %v1853
    %v1955 = vunpack.c.l.b16 %v1854
    %v1956 = vunpack.c.l.b16 %v1855
    %v1957 = vunpack.c.l.b16 %v1856
    %v1958 = vunpack.c.l.b16 %v1857
    %v1959 = vunpack.c.l.b16 %v1858
    %v1960 = vunpack.c.l.b16 %v1859
    %v1961 = vunpack.c.l.b16 %v1860
    %v1962 = vunpack.c.l.b16 %v1861
    %v1963 = vunpack.c.l.b16 %v1862
    %v1964 = vunpack.c.l.b16 %v1863
    %v1965 = vunpack.c.l.b16 %v1864
    %v1966 = vunpack.c.l.b16 %v1865
    %v1967 = vunpack.c.l.b16 %v1866
    %v1968 = vunpack.c.l.b16 %v1867
    %v1969 = vunpack.c.l.b16 %v1868
    %v1970 = vunpack.c.l.b16 %v1869
    %v1971 = vunpack.c.l.b16 %v1870
    %v1972 = vunpack.c.l.b16 %v1871
    %v1973 = vunpack.c.l.b16 %v1872
    %v1974 = vunpack.c.l.b16 %v1873
    %v1975 = vunpack.c.l.b16 %v1874
    %v1976 = vunpack.c.l.b16 %v1875
    %v1977 = vunpack.c.l.b16 %v1876
    %v1978 = vunpack.c.l.b16 %v1877
    %v1979 = vunpack.c.l.b16 %v1878
    %v1980 = vunpack.c.l.b16 %v1879
    %v1981 = vpack.c.b16 %v1934, %v1933
    %v1982 = vpack.c.b16 %v1936, %v1935
    %v1983 = vpack.c.b16 %v1938, %v1937
    %v1984 = vpack.c.b16 %v1940, %v1939
    %v1985 = vpack.c.b16 %v1942, %v1941
    %v1986 = vpack.c.b16 %v1944, %v1943
    %v1987 = vpack.c.b16 %v1946, %v1945
    %v1988 = vpack.c.b16 %v1948, %v1947
    %v1989 = vpack.c.b16 %v1950, %v1949
    %v1990 = vpack.c.b16 %v1952, %v1951
    %v1991 = vpack.c.b16 %v1954, %v1953
    %v1992 = vpack.c.b16 %v1956, %v1955
    %v1993 = vpack.c.b16 %v1958, %v1957
    %v1994 = vpack.c.b16 %v1960, %v1959
    %v1995 = vpack.c.b16 %v1962, %v1961
    %v1996 = vpack.c.b16 %v1964, %v1963
    %v1997 = vpack.c.b16 %v1966, %v1965
    %v1998 = vpack.c.b16 %v1968, %v1967
    %v1999 = vpack.c.b16 %v1970, %v1969
    %v2000 = vpack.c.b16 %v1972, %v1971
    %v2001 = vpack.c.b16 %v1974, %v1973
    %v2002 = vpack.c.b16 %v1976, %v1975
    %v2003 = vpack.c.b16 %v1978, %v1977
    %v2004 = vpack.c.b16 %v1980, %v1979
    %2029 = vmatprep.subr.bf16.mxu0 0
    %2030 = vmatpush1.bf16.msra.mxu0 %v1981
    %2031 = vmatprep.subr.bf16.mxu0 0
    %2032 = vmatpush1.bf16.msra.mxu0 %v1982
    %2033 = vmatprep.subr.bf16.mxu0 0
    %2034 = vmatpush1.bf16.msra.mxu0 %v1983
    %2035 = vmatprep.subr.bf16.mxu0 0
    %2036 = vmatpush1.bf16.msra.mxu0 %v1984
    %2037 = vmatprep.subr.bf16.mxu0 0
    %2038 = vmatpush1.bf16.msra.mxu0 %v1985
    %2039 = vmatprep.subr.bf16.mxu0 0
    %2040 = vmatpush1.bf16.msra.mxu0 %v1986
    %2041 = vmatprep.subr.bf16.mxu0 0
    %2042 = vmatpush1.bf16.msra.mxu0 %v1987
    %2043 = vmatprep.subr.bf16.mxu0 0
    %2044 = vmatpush1.bf16.msra.mxu0 %v1988
    %2045 = vmatprep.subr.bf16.mxu0 0
    %2046 = vmatpush1.bf16.msra.mxu0 %v1989
    %2047 = vmatprep.subr.bf16.mxu0 0
    %2048 = vmatpush1.bf16.msra.mxu0 %v1990
    %2049 = vmatprep.subr.bf16.mxu0 0
    %2050 = vmatpush1.bf16.msra.mxu0 %v1991
    %2051 = vmatprep.subr.bf16.mxu0 0
    %2052 = vmatpush1.bf16.msra.mxu0 %v1992
    %2053 = vmatprep.subr.bf16.mxu0 0
    %2054 = vmatpush1.bf16.msra.mxu0 %v1993
    %2055 = vmatprep.subr.bf16.mxu0 0
    %2056 = vmatpush1.bf16.msra.mxu0 %v1994
    %2057 = vmatprep.subr.bf16.mxu0 0
    %2058 = vmatpush1.bf16.msra.mxu0 %v1995
    %2059 = vmatprep.subr.bf16.mxu0 0
    %2060 = vmatpush1.bf16.msra.mxu0 %v1996
    %2061 = vmatprep.mubr.bf16.mxu0 %v1830
    %2062 = vmatmul.mubr.bf16.gmra.mrb[0].mxu0 %v1829
    %v2063 = vpop.f32.mrb[0].mxu0
    %v2064 = vadd.f32 %v1884, %v2063
    %v2065 = vpop.f32.mrb[0].mxu0
    %v2066 = vpop.f32.mrb[0].mxu0
    %v2067 = vpop.f32.mrb[0].mxu0
    %2068 = vdwg.mxu0
    %2069 = vmatprep.subr.bf16.mxu0 0
    %2070 = vmatpush1.bf16.msra.mxu0 %v1997
    %2071 = vmatprep.subr.bf16.mxu0 0
    %2072 = vmatpush1.bf16.msra.mxu0 %v1998
    %2073 = vmatprep.subr.bf16.mxu0 0
    %2074 = vmatpush1.bf16.msra.mxu0 %v1999
    %2075 = vmatprep.subr.bf16.mxu0 0
    %2076 = vmatpush1.bf16.msra.mxu0 %v2000
    %2077 = vmatprep.subr.bf16.mxu0 0
    %2078 = vmatpush1.bf16.msra.mxu0 %v2001
    %2079 = vmatprep.subr.bf16.mxu0 0
    %2080 = vmatpush1.bf16.msra.mxu0 %v2002
    %2081 = vmatprep.subr.bf16.mxu0 0
    %2082 = vmatpush1.bf16.msra.mxu0 %v2003
    %2083 = vmatprep.subr.bf16.mxu0 0
    %2084 = vmatpush1.bf16.msra.mxu0 %v2004
    %2085 = vmatprep.subr.bf16.mxu0 0
    %2086 = vmatpush1.bf16.msra.mxu0 0
    %2087 = vmatprep.subr.bf16.mxu0 0
    %2088 = vmatpush1.bf16.msra.mxu0 0
    %2089 = vmatprep.subr.bf16.mxu0 0
    %2090 = vmatpush1.bf16.msra.mxu0 0
    %2091 = vmatprep.subr.bf16.mxu0 0
    %2092 = vmatpush1.bf16.msra.mxu0 0
    %2093 = vmatprep.subr.bf16.mxu0 0
    %2094 = vmatpush1.bf16.msra.mxu0 0
    %2095 = vmatprep.subr.bf16.mxu0 0
    %2096 = vmatpush1.bf16.msra.mxu0 0
    %2097 = vmatprep.subr.bf16.mxu0 0
    %2098 = vmatpush1.bf16.msra.mxu0 0
    %2099 = vmatprep.subr.bf16.mxu0 0
    %2100 = vmatpush1.bf16.msra.mxu0 0
    %2101 = vmatprep.mubr.bf16.mxu0 0
    %2102 = vmatmul.mubr.bf16.gmra.mrb[0].mxu0 %v1831
    %v2103 = vpop.f32.mrb[0].mxu0
    %v2104 = vadd.f32 %v2064, %v2103
    %v2105 = vpop.f32.mrb[0].mxu0
    %v2106 = vpop.f32.mrb[0].mxu0
    %v2107 = vpop.f32.mrb[0].mxu0
    %2108 = vdwg.mxu0
    %2109 = vst [vmem:[#allocation11] sm:$0x3] %v2104
    // Predicated region
    $region46: #{mlp_forward.1} parent=1 // pred_check
      _
    $region47: #{mlp_forward.1} parent=1 // pred_check_branch
      %2111 = sbr.rel (0) target = $region49
    $region48: #{mlp_forward.1} parent=1 // pred_region
      %s2113 = ssub.s32 32, 32
      %2114 = vsyncadd [#allocation4], %s2113
      %s2116 = sshll.u32 [#allocation11], 4
      %s2117 = int_to_ptr.vmem [resolvable:$true] %s2116
      %2119 = dma.vmem_to_hbm [thread:$0]  %s2117, 32, %s6, [#allocation4]
    $region49: #{mlp_forward.1} parent=1 // pred_fallthru
      _
    // Predicated region
    $region50: #{mlp_forward.1} parent=1 // pred_check
      _
    $region51: #{mlp_forward.1} parent=1 // pred_check_branch
      %2121 = sbr.rel (0) target = $region53
    $region52: #{mlp_forward.1} parent=1 // pred_region
      %2122 = dma.done [#allocation4], 32
    $region53: #{mlp_forward.1} parent=1 // pred_fallthru
      _
    %2123 = vsyncpa [#allocation3], 1
    %2124 = vsyncpa [#allocation6], 1
    %2125 = vsyncpa [#allocation9], 1
    %2126 = vsyncpa [#allocation4], 1

</llo_original>
